<compile_context>
chip_gen: v5e
topology: v5e:2x2
jax: 0.10.0
libtpu: 0.0.40
codegen_flags: <defaults>
</compile_context>

<pallas_src>
import math
import jax
import jax.numpy as jnp
import numpy as np
from jax import lax
from jax.experimental import pallas as pl
from jax.experimental.pallas import tpu as pltpu

C0, C1, C2 = 64, 32, 16          # channel = [64, 32, 16]


def hand_decoder_kernel(ft_ref, coord_ref,
                        w1c_ref,
                        w2_ref, b2_ref,
                        w3_ref, b3_ref,
                        wk1_ref, bk1_ref,
                        wk2_ref, bk2_ref,
                        wk3_ref, bk3_ref,
                        rsel_ref, tselp_ref,
                        out_ref,
                        rw_ref, bias_ref):
    P = coord_ref.shape[0]       # patch size (nodes per patch)
    TB = coord_ref.shape[1]      # batch tile (multiple of 8)
    CC = C1 * C2                 # 512
    f32 = jnp.float32

    # ---------------- stage 1: decode_mlp over all (vertex p, batch b) rows ----------------
    # rows are (p, b)-ordered so every regrouping keeps TB (a multiple of 8) in the sublane
    # dimension -> all reshapes below are layout-preserving.
    cflat = coord_ref[...].reshape(P * TB, 3)                                               # (P*TB, 3)
    h = jnp.dot(cflat, w1c_ref[...], preferred_element_type=f32)                            # (P*TB, 32)
    h = h.reshape(P, TB, 32) + ft_ref[...]            # + precomputed feature@W1[:C0] + b1  # (P, TB, 32)
    h = jnp.maximum(h, 0.0).reshape(P * TB, 32)
    h = jnp.maximum(jnp.dot(h, w2_ref[...], preferred_element_type=f32) + b2_ref[...], 0.0)      # (P*TB, 16)
    recon = jnp.maximum(jnp.dot(h, w3_ref[...], preferred_element_type=f32) + b3_ref[...], 0.0)  # (P*TB, C1)

    # broadcast over c2 via one MXU matmul: rw[(p,b), c1*C2+c2] = recon[(p,b), c1]
    rw = jnp.dot(recon, rsel_ref[...], preferred_element_type=f32)                          # (P*TB, 512)
    rw_ref[...] = rw
    # hoisted bk3 term:  sum_p rw[p]*(k@Wk3 + bk3) = sum_p rw[p]*(k@Wk3) + bk3 * sum_p rw[p]
    bias_ref[...] = rw.reshape(P, TB, CC).sum(axis=0) * bk3_ref[...]                        # (TB, 512)

    # ---------------- stage 2: continuous kernel, tiled per node n ---------------------------
    def node_body(n, acc):
        # r[n, p, b] = v_p - v_n, built in-kernel (no HBM-streamed pairwise tensor)
        vn = coord_ref[n]                                                                   # (TB, 3)
        rn = (coord_ref[...] - vn[None]).reshape(P * TB, 3)                                 # (P*TB, 3)
        k = jnp.maximum(jnp.dot(rn, wk1_ref[...], preferred_element_type=f32) + bk1_ref[...], 0.0)
        k = jnp.maximum(jnp.dot(k, wk2_ref[...], preferred_element_type=f32) + bk2_ref[...], 0.0)
        kn = jnp.dot(k, wk3_ref[...], preferred_element_type=f32)                           # (P*TB, 512), bias hoisted
        # weighted aggregation over the patch (sum over p) + hoisted bias
        s = (rw_ref[...] * kn).reshape(P, TB, CC).sum(axis=0) + bias_ref[...]               # (TB, 512)
        # c1-reduction + this node's lane placement folded into one MXU matmul
        return acc + jnp.dot(s, tselp_ref[n], preferred_element_type=f32)                   # (TB, P*C2)

    acc = lax.fori_loop(0, P, node_body, jnp.zeros((TB, P * C2), f32))
    out_ref[...] = jnp.maximum(acc, 0.0)                                                    # one unmasked lane-dense store


def _pick_tb(batch):
    # batch tile: multiple of 8 (sublane tile) so in-kernel regrouping reshapes stay
    # layout-preserving; keep >=2 grid steps when possible (megacore / v7x has 2 TCs).
    # Per-step footprint with the per-node stage-2 tiling is ~(P*TB*512*4)*2 + 2-4 MiB of
    # selection constants, so TB=64 stays well under v5e's 16 MiB scoped default and
    # v7x's 64 MiB physical VMEM.
    for tb in (64, 32, 16, 8):
        if batch >= 2 * tb:
            return tb
    return 8


def hand_decoder_pallas(feature, coords, params):
    (W1, b1, W2, b2, W3, b3, Wk1, bk1, Wk2, bk2, Wk3, bk3) = params
    B = feature.shape[0]
    P = coords.shape[1]

    TB = _pick_tb(B)
    B_pad = pl.cdiv(B, TB) * TB
    if B_pad != B:
        feature = jnp.pad(feature, ((0, B_pad - B), (0, 0)))
        coords = jnp.pad(coords, ((0, B_pad - B), (0, 0), (0, 0)))

    # feature-only part of the first Linear, hoisted out of the kernel (one well-shaped
    # (B, 64) @ (64, 32) XLA matmul instead of an M=1 MXU matmul per sample in-kernel).
    feat_term = (feature @ W1[:C0] + b1).reshape(1, B_pad, 32)                    # (1, B, 32)

    # (p, b)-major coordinates; pairwise differences are built in-kernel.
    coords_pb = jnp.transpose(coords, (1, 0, 2))                                  # (P, B, 3)

    # selection matrices (plain-JAX glue; DMA'd once since their block index is constant)
    rsel = (jnp.arange(C1 * C2)[None, :] // C2 == jnp.arange(C1)[:, None]).astype(jnp.float32)  # (C1, C1*C2)
    tsel = (jnp.arange(C1 * C2)[:, None] % C2 == jnp.arange(C2)[None, :]).astype(jnp.float32)   # (C1*C2, C2)
    # per-node placement: tsel_place[n, c1*C2+c2, n*C2+c2] = 1 -> folds the c1-sum and the
    # node's lane offset into a single matmul so the output tile is built lane-dense.
    tsel_place = jnp.einsum('cd,nm->ncmd', tsel, jnp.eye(P, dtype=jnp.float32))
    tsel_place = tsel_place.reshape(P, C1 * C2, P * C2)

    row = lambda v: v.reshape(1, -1)
    args = (feat_term, coords_pb,
            W1[C0:],                      # coordinate part of the first Linear, (3, 32)
            W2, row(b2),
            W3, row(b3),
            Wk1, row(bk1),
            Wk2, row(bk2),
            Wk3, row(bk3),
            rsel, tsel_place)

    def rep_spec(a):
        nd = a.ndim
        return pl.BlockSpec(a.shape, lambda i, _nd=nd: (0,) * _nd)

    in_specs = [pl.BlockSpec((1, TB, 32), lambda i: (0, i, 0)),
                pl.BlockSpec((P, TB, 3), lambda i: (0, i, 0))]
    in_specs += [rep_spec(a) for a in args[2:]]

    out_specs = pl.BlockSpec((TB, P * C2), lambda i: (i, 0))

    out = pl.pallas_call(
        hand_decoder_kernel,
        grid=(B_pad // TB,),
        in_specs=in_specs,
        out_specs=out_specs,
        out_shape=jax.ShapeDtypeStruct((B_pad, P * C2), jnp.float32),
        scratch_shapes=[pltpu.VMEM((P * TB, C1 * C2), jnp.float32),   # rw
                        pltpu.VMEM((TB, C1 * C2), jnp.float32)],      # hoisted bk3 term
        compiler_params=pltpu.CompilerParams(
            dimension_semantics=("parallel",),
            vmem_limit_bytes=32 * 1024 * 1024),
    )(*args)

    return out.reshape(B_pad, P, C2)[:B]


def hand_decoder_reference(feature, coords, params):
    """Pure-JAX reference mirroring the PyTorch HandDecoder forward exactly."""
    (W1, b1, W2, b2, W3, b3, Wk1, bk1, Wk2, bk2, Wk3, bk3) = params
    B, P, _ = coords.shape
    x = jnp.concatenate(
        [jnp.broadcast_to(feature[:, None, :], (B, P, C0)), coords], axis=-1)     # (B, P, C0+3)
    h = jax.nn.relu(x @ W1 + b1)
    h = jax.nn.relu(h @ W2 + b2)
    recon = jax.nn.relu(h @ W3 + b3)                                              # (B, P, C1)
    outs = []
    for n in range(P):
        r = coords - coords[:, n:n + 1, :]                                        # (B, P, 3)
        k = jax.nn.relu(r @ Wk1 + bk1)
        k = jax.nn.relu(k @ Wk2 + bk2)
        kk = (k @ Wk3 + bk3).reshape(B, P, C1, C2)                                # (B, P, C1, C2)
        x2 = jnp.einsum('bpc,bpcd->bpd', recon, kk).sum(axis=1)                   # (B, C2)
        outs.append(jax.nn.relu(x2))
    return jnp.stack(outs, axis=1)                                                # (B, P, C2)


def linear_init(key, fan_in, fan_out):
    """PyTorch-style deterministic Linear init: U(-1/sqrt(fan_in), 1/sqrt(fan_in))."""
    kw, kb = jax.random.split(key)
    bound = 1.0 / math.sqrt(fan_in)
    W = jax.random.uniform(kw, (fan_in, fan_out), jnp.float32, -bound, bound)
    b = jax.random.uniform(kb, (fan_out,), jnp.float32, -bound, bound)
    return W, b


if __name__ == "__main__":
    B, P = 16, 8

    key = jax.random.PRNGKey(0)
    keys = jax.random.split(key, 8)

    W1, b1 = linear_init(keys[0], C0 + 3, 32)     # decode_mlp Linear(67, 32)
    W2, b2 = linear_init(keys[1], 32, 16)         # decode_mlp Linear(32, 16)
    W3, b3 = linear_init(keys[2], 16, C1)         # decode_mlp Linear(16, 32)
    Wk1, bk1 = linear_init(keys[3], 3, 8)         # continuous_kernel1 Linear(3, 8)
    Wk2, bk2 = linear_init(keys[4], 8, 16)        # continuous_kernel1 Linear(8, 16)
    Wk3, bk3 = linear_init(keys[5], 16, C1 * C2)  # continuous_kernel1 Linear(16, 512)
    params = (W1, b1, W2, b2, W3, b3, Wk1, bk1, Wk2, bk2, Wk3, bk3)

    feature = jax.random.normal(keys[6], (B, C0), jnp.float32)
    coords = jax.random.normal(keys[7], (B, P, 3), jnp.float32)

    out = jax.block_until_ready(hand_decoder_pallas(feature, coords, params))
    ref = hand_decoder_reference(feature, coords, params)

    assert out.shape == (B, P, C2), out.shape
    err = float(np.max(np.abs(np.asarray(out) - np.asarray(ref))))
    assert np.allclose(np.asarray(out), np.asarray(ref), rtol=2e-4, atol=2e-4), err

    print("KERNEL_OK")
</pallas_src>

<mosaic_0001>
module attributes {stable_mosaic.version = 11 : i64} {
  func.func @hand_decoder_kernel(%arg0: i32, %arg1: memref<1x8x32xf32, #tpu.memory_space<vmem>>, %arg2: memref<8x8x3xf32, #tpu.memory_space<vmem>>, %arg3: memref<3x32xf32, #tpu.memory_space<vmem>>, %arg4: memref<32x16xf32, #tpu.memory_space<vmem>>, %arg5: memref<1x16xf32, #tpu.memory_space<vmem>>, %arg6: memref<16x32xf32, #tpu.memory_space<vmem>>, %arg7: memref<1x32xf32, #tpu.memory_space<vmem>>, %arg8: memref<3x8xf32, #tpu.memory_space<vmem>>, %arg9: memref<1x8xf32, #tpu.memory_space<vmem>>, %arg10: memref<8x16xf32, #tpu.memory_space<vmem>>, %arg11: memref<1x16xf32, #tpu.memory_space<vmem>>, %arg12: memref<16x512xf32, #tpu.memory_space<vmem>>, %arg13: memref<1x512xf32, #tpu.memory_space<vmem>>, %arg14: memref<32x512xf32, #tpu.memory_space<vmem>>, %arg15: memref<8x512x128xf32, #tpu.memory_space<vmem>>, %arg16: memref<8x128xf32, #tpu.memory_space<vmem>>, %arg17: memref<64x512xf32, #tpu.memory_space<vmem>>, %arg18: memref<8x512xf32, #tpu.memory_space<vmem>>) attributes {dimension_semantics = [#tpu.dimension_semantics<parallel>], iteration_bounds = array<i64: 2>, scalar_prefetch = 0 : i64, scratch_operands = 2 : i64, tpu.core_type = #tpu.core_type<tc>, window_params = [{transform_indices = @transform_0, window_bounds = array<i64: 1, 8, 32>}, {transform_indices = @transform_1, window_bounds = array<i64: 8, 8, 3>}, {pipeline_mode = #tpu.pipeline_mode<synchronous>, transform_indices = @transform_2, window_bounds = array<i64: 3, 32>}, {pipeline_mode = #tpu.pipeline_mode<synchronous>, transform_indices = @transform_3, window_bounds = array<i64: 32, 16>}, {pipeline_mode = #tpu.pipeline_mode<synchronous>, transform_indices = @transform_4, window_bounds = array<i64: 1, 16>}, {pipeline_mode = #tpu.pipeline_mode<synchronous>, transform_indices = @transform_5, window_bounds = array<i64: 16, 32>}, {pipeline_mode = #tpu.pipeline_mode<synchronous>, transform_indices = @transform_6, window_bounds = array<i64: 1, 32>}, {pipeline_mode = #tpu.pipeline_mode<synchronous>, transform_indices = @transform_7, window_bounds = array<i64: 3, 8>}, {pipeline_mode = #tpu.pipeline_mode<synchronous>, transform_indices = @transform_8, window_bounds = array<i64: 1, 8>}, {pipeline_mode = #tpu.pipeline_mode<synchronous>, transform_indices = @transform_9, window_bounds = array<i64: 8, 16>}, {pipeline_mode = #tpu.pipeline_mode<synchronous>, transform_indices = @transform_10, window_bounds = array<i64: 1, 16>}, {pipeline_mode = #tpu.pipeline_mode<synchronous>, transform_indices = @transform_11, window_bounds = array<i64: 16, 512>}, {pipeline_mode = #tpu.pipeline_mode<synchronous>, transform_indices = @transform_12, window_bounds = array<i64: 1, 512>}, {pipeline_mode = #tpu.pipeline_mode<synchronous>, transform_indices = @transform_13, window_bounds = array<i64: 32, 512>}, {pipeline_mode = #tpu.pipeline_mode<synchronous>, transform_indices = @transform_14, window_bounds = array<i64: 8, 512, 128>}, {transform_indices = @transform_15, window_bounds = array<i64: 8, 128>}]} {
    %c0 = arith.constant 0 : index
    %c0_0 = arith.constant 0 : index
    %c0_1 = arith.constant 0 : index
    %0 = vector.load %arg2[%c0, %c0_0, %c0_1] : memref<8x8x3xf32, #tpu.memory_space<vmem>>, vector<8x8x3xf32>
    %1 = vector.shape_cast %0 : vector<8x8x3xf32> to vector<64x3xf32>
    %c0_2 = arith.constant 0 : index
    %c0_3 = arith.constant 0 : index
    %2 = vector.load %arg3[%c0_2, %c0_3] : memref<3x32xf32, #tpu.memory_space<vmem>>, vector<3x32xf32>
    %cst = arith.constant dense<0.000000e+00> : vector<64x32xf32>
    %3 = tpu.matmul %1, %2, %cst {dimension_numbers = #tpu.dot_dimension_numbers<[1], [0], [0], [1], [0, 0, 1, 1], [], []>} : vector<64x3xf32>, vector<3x32xf32>, vector<64x32xf32> -> vector<64x32xf32>
    %4 = vector.shape_cast %3 : vector<64x32xf32> to vector<8x8x32xf32>
    %c0_4 = arith.constant 0 : index
    %c0_5 = arith.constant 0 : index
    %c0_6 = arith.constant 0 : index
    %5 = vector.load %arg1[%c0_4, %c0_5, %c0_6] : memref<1x8x32xf32, #tpu.memory_space<vmem>>, vector<1x8x32xf32>
    %6 = vector.broadcast %5 : vector<1x8x32xf32> to vector<8x8x32xf32>
    %7 = arith.addf %4, %6 : vector<8x8x32xf32>
    %cst_7 = arith.constant 0.000000e+00 : f32
    %8 = vector.broadcast %cst_7 : f32 to vector<8x8x32xf32>
    %9 = arith.maximumf %7, %8 : vector<8x8x32xf32>
    %10 = vector.shape_cast %9 : vector<8x8x32xf32> to vector<64x32xf32>
    %c0_8 = arith.constant 0 : index
    %c0_9 = arith.constant 0 : index
    %11 = vector.load %arg4[%c0_8, %c0_9] : memref<32x16xf32, #tpu.memory_space<vmem>>, vector<32x16xf32>
    %cst_10 = arith.constant dense<0.000000e+00> : vector<64x16xf32>
    %12 = tpu.matmul %10, %11, %cst_10 {dimension_numbers = #tpu.dot_dimension_numbers<[1], [0], [0], [1], [0, 0, 1, 1], [], []>} : vector<64x32xf32>, vector<32x16xf32>, vector<64x16xf32> -> vector<64x16xf32>
    %c0_11 = arith.constant 0 : index
    %c0_12 = arith.constant 0 : index
    %13 = vector.load %arg5[%c0_11, %c0_12] : memref<1x16xf32, #tpu.memory_space<vmem>>, vector<1x16xf32>
    %14 = vector.broadcast %13 : vector<1x16xf32> to vector<64x16xf32>
    %15 = arith.addf %12, %14 : vector<64x16xf32>
    %cst_13 = arith.constant 0.000000e+00 : f32
    %16 = vector.broadcast %cst_13 : f32 to vector<64x16xf32>
    %17 = arith.maximumf %15, %16 : vector<64x16xf32>
    %c0_14 = arith.constant 0 : index
    %c0_15 = arith.constant 0 : index
    %18 = vector.load %arg6[%c0_14, %c0_15] : memref<16x32xf32, #tpu.memory_space<vmem>>, vector<16x32xf32>
    %cst_16 = arith.constant dense<0.000000e+00> : vector<64x32xf32>
    %19 = tpu.matmul %17, %18, %cst_16 {dimension_numbers = #tpu.dot_dimension_numbers<[1], [0], [0], [1], [0, 0, 1, 1], [], []>} : vector<64x16xf32>, vector<16x32xf32>, vector<64x32xf32> -> vector<64x32xf32>
    %c0_17 = arith.constant 0 : index
    %c0_18 = arith.constant 0 : index
    %20 = vector.load %arg7[%c0_17, %c0_18] : memref<1x32xf32, #tpu.memory_space<vmem>>, vector<1x32xf32>
    %21 = vector.broadcast %20 : vector<1x32xf32> to vector<64x32xf32>
    %22 = arith.addf %19, %21 : vector<64x32xf32>
    %cst_19 = arith.constant 0.000000e+00 : f32
    %23 = vector.broadcast %cst_19 : f32 to vector<64x32xf32>
    %24 = arith.maximumf %22, %23 : vector<64x32xf32>
    %c0_20 = arith.constant 0 : index
    %c0_21 = arith.constant 0 : index
    %25 = vector.load %arg14[%c0_20, %c0_21] : memref<32x512xf32, #tpu.memory_space<vmem>>, vector<32x512xf32>
    %cst_22 = arith.constant dense<0.000000e+00> : vector<64x512xf32>
    %26 = tpu.matmul %24, %25, %cst_22 {dimension_numbers = #tpu.dot_dimension_numbers<[1], [0], [0], [1], [0, 0, 1, 1], [], []>} : vector<64x32xf32>, vector<32x512xf32>, vector<64x512xf32> -> vector<64x512xf32>
    %c0_23 = arith.constant 0 : index
    %c0_24 = arith.constant 0 : index
    %27 = vector.load %arg17[%c0_23, %c0_24] : memref<64x512xf32, #tpu.memory_space<vmem>>, vector<64x512xf32>
    tpu.vector_store %arg17[%c0_23, %c0_24], %26 {strides = array<i32>} : memref<64x512xf32, #tpu.memory_space<vmem>>, vector<64x512xf32>,
    %28 = vector.shape_cast %26 : vector<64x512xf32> to vector<8x8x512xf32>
    %cst_25 = arith.constant dense<0.000000e+00> : vector<8x512xf32>
    %29 = vector.multi_reduction <add>, %28, %cst_25 [0] : vector<8x8x512xf32> to vector<8x512xf32>
    %c0_26 = arith.constant 0 : index
    %c0_27 = arith.constant 0 : index
    %30 = vector.load %arg13[%c0_26, %c0_27] : memref<1x512xf32, #tpu.memory_space<vmem>>, vector<1x512xf32>
    %31 = vector.broadcast %30 : vector<1x512xf32> to vector<8x512xf32>
    %32 = arith.mulf %29, %31 : vector<8x512xf32>
    %c0_28 = arith.constant 0 : index
    %c0_29 = arith.constant 0 : index
    %33 = vector.load %arg18[%c0_28, %c0_29] : memref<8x512xf32, #tpu.memory_space<vmem>>, vector<8x512xf32>
    tpu.vector_store %arg18[%c0_28, %c0_29], %32 {strides = array<i32>} : memref<8x512xf32, #tpu.memory_space<vmem>>, vector<8x512xf32>,
    %cst_30 = arith.constant 0.000000e+00 : f32
    %34 = vector.broadcast %cst_30 : f32 to vector<8x128xf32>
    %c0_i32 = arith.constant 0 : i32
    %c8_i32 = arith.constant 8 : i32
    %35 = arith.addi %c0_i32, %c8_i32 : i32
    %c1_i32 = arith.constant 1 : i32
    %36 = scf.for %arg19 = %c0_i32 to %35 step %c1_i32 iter_args(%arg20 = %34) -> (vector<8x128xf32>)  : i32 {
      %40 = arith.index_cast %arg19 : i32 to index
      %c0_35 = arith.constant 0 : index
      %c0_36 = arith.constant 0 : index
      %41 = vector.load %arg2[%40, %c0_35, %c0_36] : memref<8x8x3xf32, #tpu.memory_space<vmem>>, vector<1x8x3xf32>
      %42 = vector.shape_cast %41 : vector<1x8x3xf32> to vector<8x3xf32>
      %c0_37 = arith.constant 0 : index
      %c0_38 = arith.constant 0 : index
      %c0_39 = arith.constant 0 : index
      %43 = vector.load %arg2[%c0_37, %c0_38, %c0_39] : memref<8x8x3xf32, #tpu.memory_space<vmem>>, vector<8x8x3xf32>
      %44 = vector.shape_cast %42 : vector<8x3xf32> to vector<1x8x3xf32>
      %45 = vector.broadcast %44 : vector<1x8x3xf32> to vector<8x8x3xf32>
      %46 = arith.subf %43, %45 : vector<8x8x3xf32>
      %47 = vector.shape_cast %46 : vector<8x8x3xf32> to vector<64x3xf32>
      %c0_40 = arith.constant 0 : index
      %c0_41 = arith.constant 0 : index
      %48 = vector.load %arg8[%c0_40, %c0_41] : memref<3x8xf32, #tpu.memory_space<vmem>>, vector<3x8xf32>
      %cst_42 = arith.constant dense<0.000000e+00> : vector<64x8xf32>
      %49 = tpu.matmul %47, %48, %cst_42 {dimension_numbers = #tpu.dot_dimension_numbers<[1], [0], [0], [1], [0, 0, 1, 1], [], []>} : vector<64x3xf32>, vector<3x8xf32>, vector<64x8xf32> -> vector<64x8xf32>
      %c0_43 = arith.constant 0 : index
      %c0_44 = arith.constant 0 : index
      %50 = vector.load %arg9[%c0_43, %c0_44] : memref<1x8xf32, #tpu.memory_space<vmem>>, vector<1x8xf32>
      %51 = vector.broadcast %50 : vector<1x8xf32> to vector<64x8xf32>
      %52 = arith.addf %49, %51 : vector<64x8xf32>
      %cst_45 = arith.constant 0.000000e+00 : f32
      %53 = vector.broadcast %cst_45 : f32 to vector<64x8xf32>
      %54 = arith.maximumf %52, %53 : vector<64x8xf32>
      %c0_46 = arith.constant 0 : index
      %c0_47 = arith.constant 0 : index
      %55 = vector.load %arg10[%c0_46, %c0_47] : memref<8x16xf32, #tpu.memory_space<vmem>>, vector<8x16xf32>
      %cst_48 = arith.constant dense<0.000000e+00> : vector<64x16xf32>
      %56 = tpu.matmul %54, %55, %cst_48 {dimension_numbers = #tpu.dot_dimension_numbers<[1], [0], [0], [1], [0, 0, 1, 1], [], []>} : vector<64x8xf32>, vector<8x16xf32>, vector<64x16xf32> -> vector<64x16xf32>
      %c0_49 = arith.constant 0 : index
      %c0_50 = arith.constant 0 : index
      %57 = vector.load %arg11[%c0_49, %c0_50] : memref<1x16xf32, #tpu.memory_space<vmem>>, vector<1x16xf32>
      %58 = vector.broadcast %57 : vector<1x16xf32> to vector<64x16xf32>
      %59 = arith.addf %56, %58 : vector<64x16xf32>
      %cst_51 = arith.constant 0.000000e+00 : f32
      %60 = vector.broadcast %cst_51 : f32 to vector<64x16xf32>
      %61 = arith.maximumf %59, %60 : vector<64x16xf32>
      %c0_52 = arith.constant 0 : index
      %c0_53 = arith.constant 0 : index
      %62 = vector.load %arg12[%c0_52, %c0_53] : memref<16x512xf32, #tpu.memory_space<vmem>>, vector<16x512xf32>
      %cst_54 = arith.constant dense<0.000000e+00> : vector<64x512xf32>
      %63 = tpu.matmul %61, %62, %cst_54 {dimension_numbers = #tpu.dot_dimension_numbers<[1], [0], [0], [1], [0, 0, 1, 1], [], []>} : vector<64x16xf32>, vector<16x512xf32>, vector<64x512xf32> -> vector<64x512xf32>
      %c0_55 = arith.constant 0 : index
      %c0_56 = arith.constant 0 : index
      %64 = vector.load %arg17[%c0_55, %c0_56] : memref<64x512xf32, #tpu.memory_space<vmem>>, vector<64x512xf32>
      %65 = arith.mulf %64, %63 : vector<64x512xf32>
      %66 = vector.shape_cast %65 : vector<64x512xf32> to vector<8x8x512xf32>
      %cst_57 = arith.constant dense<0.000000e+00> : vector<8x512xf32>
      %67 = vector.multi_reduction <add>, %66, %cst_57 [0] : vector<8x8x512xf32> to vector<8x512xf32>
      %c0_58 = arith.constant 0 : index
      %c0_59 = arith.constant 0 : index
      %68 = vector.load %arg18[%c0_58, %c0_59] : memref<8x512xf32, #tpu.memory_space<vmem>>, vector<8x512xf32>
      %69 = arith.addf %67, %68 : vector<8x512xf32>
      %70 = arith.index_cast %arg19 : i32 to index
      %c0_60 = arith.constant 0 : index
      %c0_61 = arith.constant 0 : index
      %71 = vector.load %arg15[%70, %c0_60, %c0_61] : memref<8x512x128xf32, #tpu.memory_space<vmem>>, vector<1x512x128xf32>
      %72 = vector.shape_cast %71 : vector<1x512x128xf32> to vector<512x128xf32>
      %cst_62 = arith.constant dense<0.000000e+00> : vector<8x128xf32>
      %73 = tpu.matmul %69, %72, %cst_62 {dimension_numbers = #tpu.dot_dimension_numbers<[1], [0], [0], [1], [0, 0, 1, 1], [], []>} : vector<8x512xf32>, vector<512x128xf32>, vector<8x128xf32> -> vector<8x128xf32>
      %74 = arith.addf %arg20, %73 : vector<8x128xf32>
      scf.yield %74 : vector<8x128xf32>
    }
    %c8_i32_31 = arith.constant 8 : i32
    %cst_32 = arith.constant 0.000000e+00 : f32
    %37 = vector.broadcast %cst_32 : f32 to vector<8x128xf32>
    %38 = arith.maximumf %36, %37 : vector<8x128xf32>
    %c0_33 = arith.constant 0 : index
    %c0_34 = arith.constant 0 : index
    %39 = vector.load %arg16[%c0_33, %c0_34] : memref<8x128xf32, #tpu.memory_space<vmem>>, vector<8x128xf32>
    tpu.vector_store %arg16[%c0_33, %c0_34], %38 {strides = array<i32>} : memref<8x128xf32, #tpu.memory_space<vmem>>, vector<8x128xf32>,
    return
  }
  func.func @transform_0(%arg0: i32) -> (i32, i32, i32) {
    %c0_i32 = arith.constant 0 : i32
    %c0_i32_0 = arith.constant 0 : i32
    %c0_i32_1 = arith.constant 0 : i32
    return %c0_i32, %arg0, %c0_i32_0 : i32, i32, i32
  }
  func.func @transform_1(%arg0: i32) -> (i32, i32, i32) {
    %c0_i32 = arith.constant 0 : i32
    %c0_i32_0 = arith.constant 0 : i32
    %c0_i32_1 = arith.constant 0 : i32
    return %c0_i32, %arg0, %c0_i32_0 : i32, i32, i32
  }
  func.func @transform_2(%arg0: i32) -> (i32, i32) {
    %c0_i32 = arith.constant 0 : i32
    %c0_i32_0 = arith.constant 0 : i32
    %c0_i32_1 = arith.constant 0 : i32
    return %c0_i32, %c0_i32_0 : i32, i32
  }
  func.func @transform_3(%arg0: i32) -> (i32, i32) {
    %c0_i32 = arith.constant 0 : i32
    %c0_i32_0 = arith.constant 0 : i32
    %c0_i32_1 = arith.constant 0 : i32
    return %c0_i32, %c0_i32_0 : i32, i32
  }
  func.func @transform_4(%arg0: i32) -> (i32, i32) {
    %c0_i32 = arith.constant 0 : i32
    %c0_i32_0 = arith.constant 0 : i32
    %c0_i32_1 = arith.constant 0 : i32
    return %c0_i32, %c0_i32_0 : i32, i32
  }
  func.func @transform_5(%arg0: i32) -> (i32, i32) {
    %c0_i32 = arith.constant 0 : i32
    %c0_i32_0 = arith.constant 0 : i32
    %c0_i32_1 = arith.constant 0 : i32
    return %c0_i32, %c0_i32_0 : i32, i32
  }
  func.func @transform_6(%arg0: i32) -> (i32, i32) {
    %c0_i32 = arith.constant 0 : i32
    %c0_i32_0 = arith.constant 0 : i32
    %c0_i32_1 = arith.constant 0 : i32
    return %c0_i32, %c0_i32_0 : i32, i32
  }
  func.func @transform_7(%arg0: i32) -> (i32, i32) {
    %c0_i32 = arith.constant 0 : i32
    %c0_i32_0 = arith.constant 0 : i32
    %c0_i32_1 = arith.constant 0 : i32
    return %c0_i32, %c0_i32_0 : i32, i32
  }
  func.func @transform_8(%arg0: i32) -> (i32, i32) {
    %c0_i32 = arith.constant 0 : i32
    %c0_i32_0 = arith.constant 0 : i32
    %c0_i32_1 = arith.constant 0 : i32
    return %c0_i32, %c0_i32_0 : i32, i32
  }
  func.func @transform_9(%arg0: i32) -> (i32, i32) {
    %c0_i32 = arith.constant 0 : i32
    %c0_i32_0 = arith.constant 0 : i32
    %c0_i32_1 = arith.constant 0 : i32
    return %c0_i32, %c0_i32_0 : i32, i32
  }
  func.func @transform_10(%arg0: i32) -> (i32, i32) {
    %c0_i32 = arith.constant 0 : i32
    %c0_i32_0 = arith.constant 0 : i32
    %c0_i32_1 = arith.constant 0 : i32
    return %c0_i32, %c0_i32_0 : i32, i32
  }
  func.func @transform_11(%arg0: i32) -> (i32, i32) {
    %c0_i32 = arith.constant 0 : i32
    %c0_i32_0 = arith.constant 0 : i32
    %c0_i32_1 = arith.constant 0 : i32
    return %c0_i32, %c0_i32_0 : i32, i32
  }
  func.func @transform_12(%arg0: i32) -> (i32, i32) {
    %c0_i32 = arith.constant 0 : i32
    %c0_i32_0 = arith.constant 0 : i32
    %c0_i32_1 = arith.constant 0 : i32
    return %c0_i32, %c0_i32_0 : i32, i32
  }
  func.func @transform_13(%arg0: i32) -> (i32, i32) {
    %c0_i32 = arith.constant 0 : i32
    %c0_i32_0 = arith.constant 0 : i32
    %c0_i32_1 = arith.constant 0 : i32
    return %c0_i32, %c0_i32_0 : i32, i32
  }
  func.func @transform_14(%arg0: i32) -> (i32, i32, i32) {
    %c0_i32 = arith.constant 0 : i32
    %c0_i32_0 = arith.constant 0 : i32
    %c0_i32_1 = arith.constant 0 : i32
    %c0_i32_2 = arith.constant 0 : i32
    return %c0_i32, %c0_i32_0, %c0_i32_1 : i32, i32, i32
  }
  func.func @transform_15(%arg0: i32) -> (i32, i32) {
    %c0_i32 = arith.constant 0 : i32
    %c0_i32_0 = arith.constant 0 : i32
    return %arg0, %c0_i32 : i32, i32
  }
}

</mosaic_0001>

<llo_original>
// kernel: tpu_custom_call.1
$region0: #{tpu_custom_call.1}
  #allocation0 [shape = 'u32[]', space=smem, size = 0x4, offset = 0x4, fixed_abs, tag = 'smem constant byte address 0x4 - core index']
  #allocation1 [shape = 'u32[72,128]{1,0:T(1,128)}', space=vmem, size = 0x9000, scoped, tag = 'internal scratch']
  #allocation2 [shape = 'f32[64,512]{1,0:T(8,128)}', space=vmem, size = 0x20000, scoped, tag = 'scratch operand']
  #allocation3 [shape = 'f32[8,512]{1,0:T(8,128)}', space=vmem, size = 0x4000, scoped, tag = 'scratch operand']
  %s0 = inlined_call_operand.hbm [shape: f32[1,16,32], index: 0, kind: input, shape index: {}]
  %s1 = inlined_call_operand.vmem [shape: f32[8,16,3], index: 1, kind: input, shape index: {}]
  %s2 = inlined_call_operand.hbm [shape: f32[3,32], index: 2, kind: input, shape index: {}]
  %s3 = inlined_call_operand.vmem [shape: f32[32,16], index: 3, kind: input, shape index: {}]
  %s4 = inlined_call_operand.hbm [shape: f32[1,16], index: 4, kind: input, shape index: {}]
  %s5 = inlined_call_operand.hbm [shape: f32[16,32], index: 5, kind: input, shape index: {}]
  %s6 = inlined_call_operand.hbm [shape: f32[1,32], index: 6, kind: input, shape index: {}]
  %s7 = inlined_call_operand.hbm [shape: f32[3,8], index: 7, kind: input, shape index: {}]
  %s8 = inlined_call_operand.hbm [shape: f32[1,8], index: 8, kind: input, shape index: {}]
  %s9 = inlined_call_operand.hbm [shape: f32[8,16], index: 9, kind: input, shape index: {}]
  %s10 = inlined_call_operand.hbm [shape: f32[1,16], index: 10, kind: input, shape index: {}]
  %s11 = inlined_call_operand.hbm [shape: f32[16,512], index: 11, kind: input, shape index: {}]
  %s12 = inlined_call_operand.hbm [shape: f32[1,512], index: 12, kind: input, shape index: {}]
  %s13 = inlined_call_operand.hbm [shape: f32[32,512], index: 13, kind: input, shape index: {}]
  %s14 = inlined_call_operand.hbm [shape: f32[8,512,128], index: 14, kind: input, shape index: {}]
  %s15 = inlined_call_operand.hbm [shape: f32[16,128], index: 15, kind: output, shape index: {}]
  %s16 = sld [smem:[#allocation0]]
  $region190: #{tpu_custom_call.1} parent=0
    _
  %s18 = ssub.s32 1, %s16
  %s19 = scalar_select 0, %s18, %s16
  $region1: #{tpu_custom_call.1} parent=0
    #allocation4 [shape = 'u8[8192]{0}', space=vmem, size = 0x2000, scoped, tag = 'input window, operand 0']
    #allocation5 [shape = 's32[2]{0}', space=sflag, size = 0x8, scoped, tag = 'scoped memory for tpu_custom_call.1']
    #allocation6 [shape = 's32[2]{0}', space=sflag, size = 0x8, scoped, tag = 'scoped memory for tpu_custom_call.1']
    #allocation7 [shape = 'u8[65536]{0}', space=vmem, size = 0x10000, scoped, tag = 'input window, operand 1']
    #allocation8 [shape = 'u8[2048]{0}', space=vmem, size = 0x800, scoped, tag = 'input window, operand 2, single buffered']
    #allocation9 [shape = 's32[1]{0}', space=sflag, size = 0x4, scoped, tag = 'scoped memory for tpu_custom_call.1']
    #allocation10 [shape = 'u8[512]{0}', space=vmem, size = 0x400, scoped, tag = 'input window, operand 4, single buffered']
    #allocation11 [shape = 'u8[8192]{0}', space=vmem, size = 0x2000, scoped, tag = 'input window, operand 5, single buffered']
    #allocation12 [shape = 's32[1]{0}', space=sflag, size = 0x4, scoped, tag = 'scoped memory for tpu_custom_call.1']
    #allocation13 [shape = 'u8[512]{0}', space=vmem, size = 0x400, scoped, tag = 'input window, operand 6, single buffered']
    #allocation14 [shape = 'u8[2048]{0}', space=vmem, size = 0x800, scoped, tag = 'input window, operand 7, single buffered']
    #allocation15 [shape = 's32[1]{0}', space=sflag, size = 0x4, scoped, tag = 'scoped memory for tpu_custom_call.1']
    #allocation16 [shape = 'u8[512]{0}', space=vmem, size = 0x400, scoped, tag = 'input window, operand 8, single buffered']
    #allocation17 [shape = 'u8[4096]{0}', space=vmem, size = 0x1000, scoped, tag = 'input window, operand 9, single buffered']
    #allocation18 [shape = 's32[1]{0}', space=sflag, size = 0x4, scoped, tag = 'scoped memory for tpu_custom_call.1']
    #allocation19 [shape = 'u8[512]{0}', space=vmem, size = 0x400, scoped, tag = 'input window, operand 10, single buffered']
    #allocation20 [shape = 'u8[32768]{0}', space=vmem, size = 0x8000, scoped, tag = 'input window, operand 11, single buffered']
    #allocation21 [shape = 's32[1]{0}', space=sflag, size = 0x4, scoped, tag = 'scoped memory for tpu_custom_call.1']
    #allocation22 [shape = 'u8[2048]{0}', space=vmem, size = 0x800, scoped, tag = 'input window, operand 12, single buffered']
    #allocation23 [shape = 'u8[65536]{0}', space=vmem, size = 0x10000, scoped, tag = 'input window, operand 13, single buffered']
    #allocation24 [shape = 's32[1]{0}', space=sflag, size = 0x4, scoped, tag = 'scoped memory for tpu_custom_call.1']
    #allocation25 [shape = 'u8[2097152]{0}', space=vmem, size = 0x200000, scoped, tag = 'input window, operand 14, single buffered']
    #allocation26 [shape = 'u8[8192]{0}', space=vmem, size = 0x2000, scoped, tag = 'output window, operand 0']
    %20 = vsyncpa [#allocation5], 0
    %s21 = scalar_lea.sflag [#allocation5], 1
    %22 = vsyncpa %s21, 0
    %23 = vsyncpa [#allocation9], 0
    %24 = vsyncpa [#allocation12], 0
    %25 = vsyncpa [#allocation15], 0
    %26 = vsyncpa [#allocation18], 0
    %27 = vsyncpa [#allocation21], 0
    %28 = vsyncpa [#allocation24], 0
    %29 = vsyncpa [#allocation6], 0
    %s30 = scalar_lea.sflag [#allocation6], 1
    %31 = vsyncpa %s30, 0
    loop: start=0, step=1, limit=4
    $region2: #{tpu_custom_call.1} parent=1 // loop_pre_header
      _
    $region3: #{tpu_custom_call.1} parent=1 // loop_header
      %s33 = sphi 0, %s37
      %p34 = scmp.ge.s32.totalorder %s33, 4
      %s43 = sphi 0, %s45
      %s46 = sphi 0, %s43
      %s47 = sphi 0, %s46
      %s63 = sphi 0, %s47
      %s69 = sphi 0, %s71
      %s72 = sphi 0, %s69
      %s73 = sphi 0, %s72
      %s89 = sphi 0, %s73
      %s93 = sphi 0, %s93
      %s95 = sphi 0, %s93
      %s96 = sphi 0, %s95
      %s110 = sphi 0, %s96
      %s114 = sphi 0, %s114
      %s116 = sphi 0, %s114
      %s117 = sphi 0, %s116
      %s131 = sphi 0, %s117
      %s135 = sphi 0, %s135
      %s137 = sphi 0, %s135
      %s138 = sphi 0, %s137
      %s152 = sphi 0, %s138
      %s156 = sphi 0, %s156
      %s158 = sphi 0, %s156
      %s159 = sphi 0, %s158
      %s173 = sphi 0, %s159
      %s177 = sphi 0, %s177
      %s179 = sphi 0, %s177
      %s180 = sphi 0, %s179
      %s194 = sphi 0, %s180
      %s198 = sphi 0, %s198
      %s200 = sphi 0, %s198
      %s201 = sphi 0, %s200
      %s215 = sphi 0, %s201
      %s219 = sphi 0, %s219
      %s221 = sphi 0, %s219
      %s222 = sphi 0, %s221
      %s236 = sphi 0, %s222
      %s240 = sphi 0, %s240
      %s242 = sphi 0, %s240
      %s243 = sphi 0, %s242
      %s257 = sphi 0, %s243
      %s261 = sphi 0, %s261
      %s263 = sphi 0, %s261
      %s264 = sphi 0, %s263
      %s278 = sphi 0, %s264
      %s282 = sphi 0, %s282
      %s284 = sphi 0, %s282
      %s285 = sphi 0, %s284
      %s299 = sphi 0, %s285
      %s303 = sphi 0, %s303
      %s305 = sphi 0, %s303
      %s306 = sphi 0, %s305
      %s320 = sphi 0, %s306
      %s324 = sphi 0, %s324
      %s326 = sphi 0, %s324
      %s327 = sphi 0, %s326
      %s341 = sphi 0, %s327
      %s345 = sphi 0, %s345
      %s347 = sphi 0, %s345
      %s348 = sphi 0, %s347
      %s362 = sphi 0, %s348
      %s368 = sphi 0, %s370
      %s371 = sphi 0, %s368
      %s372 = sphi 0, %s371
      %s388 = sphi 0, %s372
    $region4: #{tpu_custom_call.1} parent=1 // loop_header_branch
      %36 = sbr.rel (%p34) target = $region8
    $region5: #{tpu_custom_call.1} parent=1 // loop_body
      %s38 = ssub.s32 %s33, 1
      %s39 = ssub.s32 %s33, 2
      %s40 = sadd.s32 %s33, 1
      %s41 = ssub.s32 %s33, %s40
      %p42 = scmp.eq.s32.totalorder %s41, 0
      %s44 = sadd.s32 %s43, 1
      %s45 = scalar_select %p42, %s43, %s44
      %p48 = pneg %p42
      %p49 = scmp.eq.s32.totalorder %s33, 1
      %p50 = por %p48, %p49
      %p51 = scmp.ne.s32.totalorder %s43, %s46
      %p52 = scmp.eq.s32.totalorder %s33, 0
      %p53 = por %p51, %p52
      %p54 = scmp.ne.s32.totalorder %s43, %s46
      %p55 = scmp.eq.s32.totalorder %s38, 1
      %p56 = por %p54, %p55
      %p57 = scmp.ne.s32.totalorder %s46, %s47
      %p58 = scmp.eq.s32.totalorder %s38, 0
      %p59 = por %p57, %p58
      %p60 = scmp.ne.s32.totalorder %s46, %s47
      %p61 = scmp.eq.s32.totalorder %s39, 1
      %p62 = por %p60, %p61
      %p64 = scmp.ne.s32.totalorder %s47, %s63
      %p65 = scmp.eq.s32.totalorder %s39, 0
      %p66 = por %p64, %p65
      %s67 = ssub.s32 %s33, %s40
      %p68 = scmp.eq.s32.totalorder %s67, 0
      %s70 = sadd.s32 %s69, 1
      %s71 = scalar_select %p68, %s69, %s70
      %p74 = pneg %p68
      %p75 = scmp.eq.s32.totalorder %s33, 1
      %p76 = por %p74, %p75
      %p77 = scmp.ne.s32.totalorder %s69, %s72
      %p78 = scmp.eq.s32.totalorder %s33, 0
      %p79 = por %p77, %p78
      %p80 = scmp.ne.s32.totalorder %s69, %s72
      %p81 = scmp.eq.s32.totalorder %s38, 1
      %p82 = por %p80, %p81
      %p83 = scmp.ne.s32.totalorder %s72, %s73
      %p84 = scmp.eq.s32.totalorder %s38, 0
      %p85 = por %p83, %p84
      %p86 = scmp.ne.s32.totalorder %s72, %s73
      %p87 = scmp.eq.s32.totalorder %s39, 1
      %p88 = por %p86, %p87
      %p90 = scmp.ne.s32.totalorder %s73, %s89
      %p91 = scmp.eq.s32.totalorder %s39, 0
      %p92 = por %p90, %p91
      %s94 = sadd.s32 %s93, 1
      %p97 = scmp.eq.s32.totalorder %s33, 1
      %p98 = scmp.ne.s32.totalorder %s93, %s95
      %p99 = scmp.eq.s32.totalorder %s33, 0
      %p100 = por %p98, %p99
      %p101 = scmp.ne.s32.totalorder %s93, %s95
      %p102 = scmp.eq.s32.totalorder %s38, 1
      %p103 = por %p101, %p102
      %p104 = scmp.ne.s32.totalorder %s95, %s96
      %p105 = scmp.eq.s32.totalorder %s38, 0
      %p106 = por %p104, %p105
      %p107 = scmp.ne.s32.totalorder %s95, %s96
      %p108 = scmp.eq.s32.totalorder %s39, 1
      %p109 = por %p107, %p108
      %p111 = scmp.ne.s32.totalorder %s96, %s110
      %p112 = scmp.eq.s32.totalorder %s39, 0
      %p113 = por %p111, %p112
      %s115 = sadd.s32 %s114, 1
      %p118 = scmp.eq.s32.totalorder %s33, 1
      %p119 = scmp.ne.s32.totalorder %s114, %s116
      %p120 = scmp.eq.s32.totalorder %s33, 0
      %p121 = por %p119, %p120
      %p122 = scmp.ne.s32.totalorder %s114, %s116
      %p123 = scmp.eq.s32.totalorder %s38, 1
      %p124 = por %p122, %p123
      %p125 = scmp.ne.s32.totalorder %s116, %s117
      %p126 = scmp.eq.s32.totalorder %s38, 0
      %p127 = por %p125, %p126
      %p128 = scmp.ne.s32.totalorder %s116, %s117
      %p129 = scmp.eq.s32.totalorder %s39, 1
      %p130 = por %p128, %p129
      %p132 = scmp.ne.s32.totalorder %s117, %s131
      %p133 = scmp.eq.s32.totalorder %s39, 0
      %p134 = por %p132, %p133
      %s136 = sadd.s32 %s135, 1
      %p139 = scmp.eq.s32.totalorder %s33, 1
      %p140 = scmp.ne.s32.totalorder %s135, %s137
      %p141 = scmp.eq.s32.totalorder %s33, 0
      %p142 = por %p140, %p141
      %p143 = scmp.ne.s32.totalorder %s135, %s137
      %p144 = scmp.eq.s32.totalorder %s38, 1
      %p145 = por %p143, %p144
      %p146 = scmp.ne.s32.totalorder %s137, %s138
      %p147 = scmp.eq.s32.totalorder %s38, 0
      %p148 = por %p146, %p147
      %p149 = scmp.ne.s32.totalorder %s137, %s138
      %p150 = scmp.eq.s32.totalorder %s39, 1
      %p151 = por %p149, %p150
      %p153 = scmp.ne.s32.totalorder %s138, %s152
      %p154 = scmp.eq.s32.totalorder %s39, 0
      %p155 = por %p153, %p154
      %s157 = sadd.s32 %s156, 1
      %p160 = scmp.eq.s32.totalorder %s33, 1
      %p161 = scmp.ne.s32.totalorder %s156, %s158
      %p162 = scmp.eq.s32.totalorder %s33, 0
      %p163 = por %p161, %p162
      %p164 = scmp.ne.s32.totalorder %s156, %s158
      %p165 = scmp.eq.s32.totalorder %s38, 1
      %p166 = por %p164, %p165
      %p167 = scmp.ne.s32.totalorder %s158, %s159
      %p168 = scmp.eq.s32.totalorder %s38, 0
      %p169 = por %p167, %p168
      %p170 = scmp.ne.s32.totalorder %s158, %s159
      %p171 = scmp.eq.s32.totalorder %s39, 1
      %p172 = por %p170, %p171
      %p174 = scmp.ne.s32.totalorder %s159, %s173
      %p175 = scmp.eq.s32.totalorder %s39, 0
      %p176 = por %p174, %p175
      %s178 = sadd.s32 %s177, 1
      %p181 = scmp.eq.s32.totalorder %s33, 1
      %p182 = scmp.ne.s32.totalorder %s177, %s179
      %p183 = scmp.eq.s32.totalorder %s33, 0
      %p184 = por %p182, %p183
      %p185 = scmp.ne.s32.totalorder %s177, %s179
      %p186 = scmp.eq.s32.totalorder %s38, 1
      %p187 = por %p185, %p186
      %p188 = scmp.ne.s32.totalorder %s179, %s180
      %p189 = scmp.eq.s32.totalorder %s38, 0
      %p190 = por %p188, %p189
      %p191 = scmp.ne.s32.totalorder %s179, %s180
      %p192 = scmp.eq.s32.totalorder %s39, 1
      %p193 = por %p191, %p192
      %p195 = scmp.ne.s32.totalorder %s180, %s194
      %p196 = scmp.eq.s32.totalorder %s39, 0
      %p197 = por %p195, %p196
      %s199 = sadd.s32 %s198, 1
      %p202 = scmp.eq.s32.totalorder %s33, 1
      %p203 = scmp.ne.s32.totalorder %s198, %s200
      %p204 = scmp.eq.s32.totalorder %s33, 0
      %p205 = por %p203, %p204
      %p206 = scmp.ne.s32.totalorder %s198, %s200
      %p207 = scmp.eq.s32.totalorder %s38, 1
      %p208 = por %p206, %p207
      %p209 = scmp.ne.s32.totalorder %s200, %s201
      %p210 = scmp.eq.s32.totalorder %s38, 0
      %p211 = por %p209, %p210
      %p212 = scmp.ne.s32.totalorder %s200, %s201
      %p213 = scmp.eq.s32.totalorder %s39, 1
      %p214 = por %p212, %p213
      %p216 = scmp.ne.s32.totalorder %s201, %s215
      %p217 = scmp.eq.s32.totalorder %s39, 0
      %p218 = por %p216, %p217
      %s220 = sadd.s32 %s219, 1
      %p223 = scmp.eq.s32.totalorder %s33, 1
      %p224 = scmp.ne.s32.totalorder %s219, %s221
      %p225 = scmp.eq.s32.totalorder %s33, 0
      %p226 = por %p224, %p225
      %p227 = scmp.ne.s32.totalorder %s219, %s221
      %p228 = scmp.eq.s32.totalorder %s38, 1
      %p229 = por %p227, %p228
      %p230 = scmp.ne.s32.totalorder %s221, %s222
      %p231 = scmp.eq.s32.totalorder %s38, 0
      %p232 = por %p230, %p231
      %p233 = scmp.ne.s32.totalorder %s221, %s222
      %p234 = scmp.eq.s32.totalorder %s39, 1
      %p235 = por %p233, %p234
      %p237 = scmp.ne.s32.totalorder %s222, %s236
      %p238 = scmp.eq.s32.totalorder %s39, 0
      %p239 = por %p237, %p238
      %s241 = sadd.s32 %s240, 1
      %p244 = scmp.eq.s32.totalorder %s33, 1
      %p245 = scmp.ne.s32.totalorder %s240, %s242
      %p246 = scmp.eq.s32.totalorder %s33, 0
      %p247 = por %p245, %p246
      %p248 = scmp.ne.s32.totalorder %s240, %s242
      %p249 = scmp.eq.s32.totalorder %s38, 1
      %p250 = por %p248, %p249
      %p251 = scmp.ne.s32.totalorder %s242, %s243
      %p252 = scmp.eq.s32.totalorder %s38, 0
      %p253 = por %p251, %p252
      %p254 = scmp.ne.s32.totalorder %s242, %s243
      %p255 = scmp.eq.s32.totalorder %s39, 1
      %p256 = por %p254, %p255
      %p258 = scmp.ne.s32.totalorder %s243, %s257
      %p259 = scmp.eq.s32.totalorder %s39, 0
      %p260 = por %p258, %p259
      %s262 = sadd.s32 %s261, 1
      %p265 = scmp.eq.s32.totalorder %s33, 1
      %p266 = scmp.ne.s32.totalorder %s261, %s263
      %p267 = scmp.eq.s32.totalorder %s33, 0
      %p268 = por %p266, %p267
      %p269 = scmp.ne.s32.totalorder %s261, %s263
      %p270 = scmp.eq.s32.totalorder %s38, 1
      %p271 = por %p269, %p270
      %p272 = scmp.ne.s32.totalorder %s263, %s264
      %p273 = scmp.eq.s32.totalorder %s38, 0
      %p274 = por %p272, %p273
      %p275 = scmp.ne.s32.totalorder %s263, %s264
      %p276 = scmp.eq.s32.totalorder %s39, 1
      %p277 = por %p275, %p276
      %p279 = scmp.ne.s32.totalorder %s264, %s278
      %p280 = scmp.eq.s32.totalorder %s39, 0
      %p281 = por %p279, %p280
      %s283 = sadd.s32 %s282, 1
      %p286 = scmp.eq.s32.totalorder %s33, 1
      %p287 = scmp.ne.s32.totalorder %s282, %s284
      %p288 = scmp.eq.s32.totalorder %s33, 0
      %p289 = por %p287, %p288
      %p290 = scmp.ne.s32.totalorder %s282, %s284
      %p291 = scmp.eq.s32.totalorder %s38, 1
      %p292 = por %p290, %p291
      %p293 = scmp.ne.s32.totalorder %s284, %s285
      %p294 = scmp.eq.s32.totalorder %s38, 0
      %p295 = por %p293, %p294
      %p296 = scmp.ne.s32.totalorder %s284, %s285
      %p297 = scmp.eq.s32.totalorder %s39, 1
      %p298 = por %p296, %p297
      %p300 = scmp.ne.s32.totalorder %s285, %s299
      %p301 = scmp.eq.s32.totalorder %s39, 0
      %p302 = por %p300, %p301
      %s304 = sadd.s32 %s303, 1
      %p307 = scmp.eq.s32.totalorder %s33, 1
      %p308 = scmp.ne.s32.totalorder %s303, %s305
      %p309 = scmp.eq.s32.totalorder %s33, 0
      %p310 = por %p308, %p309
      %p311 = scmp.ne.s32.totalorder %s303, %s305
      %p312 = scmp.eq.s32.totalorder %s38, 1
      %p313 = por %p311, %p312
      %p314 = scmp.ne.s32.totalorder %s305, %s306
      %p315 = scmp.eq.s32.totalorder %s38, 0
      %p316 = por %p314, %p315
      %p317 = scmp.ne.s32.totalorder %s305, %s306
      %p318 = scmp.eq.s32.totalorder %s39, 1
      %p319 = por %p317, %p318
      %p321 = scmp.ne.s32.totalorder %s306, %s320
      %p322 = scmp.eq.s32.totalorder %s39, 0
      %p323 = por %p321, %p322
      %s325 = sadd.s32 %s324, 1
      %p328 = scmp.eq.s32.totalorder %s33, 1
      %p329 = scmp.ne.s32.totalorder %s324, %s326
      %p330 = scmp.eq.s32.totalorder %s33, 0
      %p331 = por %p329, %p330
      %p332 = scmp.ne.s32.totalorder %s324, %s326
      %p333 = scmp.eq.s32.totalorder %s38, 1
      %p334 = por %p332, %p333
      %p335 = scmp.ne.s32.totalorder %s326, %s327
      %p336 = scmp.eq.s32.totalorder %s38, 0
      %p337 = por %p335, %p336
      %p338 = scmp.ne.s32.totalorder %s326, %s327
      %p339 = scmp.eq.s32.totalorder %s39, 1
      %p340 = por %p338, %p339
      %p342 = scmp.ne.s32.totalorder %s327, %s341
      %p343 = scmp.eq.s32.totalorder %s39, 0
      %p344 = por %p342, %p343
      %s346 = sadd.s32 %s345, 1
      %p349 = scmp.eq.s32.totalorder %s33, 1
      %p350 = scmp.ne.s32.totalorder %s345, %s347
      %p351 = scmp.eq.s32.totalorder %s33, 0
      %p352 = por %p350, %p351
      %p353 = scmp.ne.s32.totalorder %s345, %s347
      %p354 = scmp.eq.s32.totalorder %s38, 1
      %p355 = por %p353, %p354
      %p356 = scmp.ne.s32.totalorder %s347, %s348
      %p357 = scmp.eq.s32.totalorder %s38, 0
      %p358 = por %p356, %p357
      %p359 = scmp.ne.s32.totalorder %s347, %s348
      %p360 = scmp.eq.s32.totalorder %s39, 1
      %p361 = por %p359, %p360
      %p363 = scmp.ne.s32.totalorder %s348, %s362
      %p364 = scmp.eq.s32.totalorder %s39, 0
      %p365 = por %p363, %p364
      %s366 = ssub.s32 %s33, %s40
      %p367 = scmp.eq.s32.totalorder %s366, 0
      %s369 = sadd.s32 %s368, 1
      %s370 = scalar_select %p367, %s368, %s369
      %p373 = pneg %p367
      %p374 = scmp.eq.s32.totalorder %s33, 1
      %p375 = por %p373, %p374
      %p376 = scmp.ne.s32.totalorder %s368, %s371
      %p377 = scmp.eq.s32.totalorder %s33, 0
      %p378 = por %p376, %p377
      %p379 = scmp.ne.s32.totalorder %s368, %s371
      %p380 = scmp.eq.s32.totalorder %s38, 1
      %p381 = por %p379, %p380
      %p382 = scmp.ne.s32.totalorder %s371, %s372
      %p383 = scmp.eq.s32.totalorder %s38, 0
      %p384 = por %p382, %p383
      %p385 = scmp.ne.s32.totalorder %s371, %s372
      %p386 = scmp.eq.s32.totalorder %s39, 1
      %p387 = por %p385, %p386
      %p389 = scmp.ne.s32.totalorder %s372, %s388
      %p390 = scmp.eq.s32.totalorder %s39, 0
      %p391 = por %p389, %p390
      %p392 = scmp.le.s32.totalorder 1, %s33
      %p393 = scmp.lt.s32.totalorder %s33, 3
      %p394 = pnand %p392, %p393
      %p395 = pneg %p394
      // Predicated region
      $region9: #{tpu_custom_call.1} parent=5 // pred_check
        _
      $region10: #{tpu_custom_call.1} parent=5 // pred_check_branch
        %397 = sbr.rel (%p394) target = $region12
      $region11: #{tpu_custom_call.1} parent=5 // pred_region
        %s398 = ssub.s32 %s33, 1
        // Predicated region
        $region13: #{tpu_custom_call.1} parent=11 // pred_check
          %p399 = pneg %p106
        $region14: #{tpu_custom_call.1} parent=11 // pred_check_branch
          %401 = sbr.rel (%p399) target = $region16
        $region15: #{tpu_custom_call.1} parent=11 // pred_region
          %403 = vsyncadd [#allocation9], 0
          %s405 = sshll.u32 %s2, 4
          %s406 = int_to_ptr.hbm [resolvable:$true] %s405
          %s407 = sshll.u32 [#allocation8], 4
          %s408 = int_to_ptr.vmem [resolvable:$true] %s407
          %410 = dma.hbm_to_vmem [thread:$0]  %s406, 64, %s408, [#allocation9]
        $region16: #{tpu_custom_call.1} parent=11 // pred_fallthru
          _
        // Predicated region
        $region17: #{tpu_custom_call.1} parent=11 // pred_check
          %p411 = pneg %p127
        $region18: #{tpu_custom_call.1} parent=11 // pred_check_branch
          %413 = sbr.rel (%p411) target = $region20
        $region19: #{tpu_custom_call.1} parent=11 // pred_region
          _
        $region20: #{tpu_custom_call.1} parent=11 // pred_fallthru
          _
        // Predicated region
        $region21: #{tpu_custom_call.1} parent=11 // pred_check
          %p414 = pneg %p148
        $region22: #{tpu_custom_call.1} parent=11 // pred_check_branch
          %416 = sbr.rel (%p414) target = $region24
        $region23: #{tpu_custom_call.1} parent=11 // pred_region
          %418 = vsyncadd [#allocation9], 0
          %s420 = sshll.u32 %s4, 4
          %s421 = int_to_ptr.hbm [resolvable:$true] %s420
          %s422 = sshll.u32 [#allocation10], 4
          %s423 = int_to_ptr.vmem [resolvable:$true] %s422
          %425 = dma.hbm_to_vmem [thread:$0]  %s421, 16, %s423, [#allocation9]
        $region24: #{tpu_custom_call.1} parent=11 // pred_fallthru
          _
        // Predicated region
        $region25: #{tpu_custom_call.1} parent=11 // pred_check
          %p426 = pneg %p169
        $region26: #{tpu_custom_call.1} parent=11 // pred_check_branch
          %428 = sbr.rel (%p426) target = $region28
        $region27: #{tpu_custom_call.1} parent=11 // pred_region
          %430 = vsyncadd [#allocation12], 0
          %s431 = sshll.u32 %s5, 4
          %s432 = int_to_ptr.hbm [resolvable:$true] %s431
          %s433 = sshll.u32 [#allocation11], 4
          %s434 = int_to_ptr.vmem [resolvable:$true] %s433
          %439 = dma.hbm_to_vmem [thread:$0]  %s432, 256, %s434, [#allocation12], 128, 128, 8
        $region28: #{tpu_custom_call.1} parent=11 // pred_fallthru
          _
        // Predicated region
        $region29: #{tpu_custom_call.1} parent=11 // pred_check
          %p440 = pneg %p190
        $region30: #{tpu_custom_call.1} parent=11 // pred_check_branch
          %442 = sbr.rel (%p440) target = $region32
        $region31: #{tpu_custom_call.1} parent=11 // pred_region
          %444 = vsyncadd [#allocation12], 0
          %s446 = sshll.u32 %s6, 4
          %s447 = int_to_ptr.hbm [resolvable:$true] %s446
          %s448 = sshll.u32 [#allocation13], 4
          %s449 = int_to_ptr.vmem [resolvable:$true] %s448
          %451 = dma.hbm_to_vmem [thread:$0]  %s447, 16, %s449, [#allocation12]
        $region32: #{tpu_custom_call.1} parent=11 // pred_fallthru
          _
        // Predicated region
        $region33: #{tpu_custom_call.1} parent=11 // pred_check
          %p452 = pneg %p211
        $region34: #{tpu_custom_call.1} parent=11 // pred_check_branch
          %454 = sbr.rel (%p452) target = $region36
        $region35: #{tpu_custom_call.1} parent=11 // pred_region
          %456 = vsyncadd [#allocation15], 0
          %s458 = sshll.u32 %s7, 4
          %s459 = int_to_ptr.hbm [resolvable:$true] %s458
          %s460 = sshll.u32 [#allocation14], 4
          %s461 = int_to_ptr.vmem [resolvable:$true] %s460
          %463 = dma.hbm_to_vmem [thread:$0]  %s459, 64, %s461, [#allocation15]
        $region36: #{tpu_custom_call.1} parent=11 // pred_fallthru
          _
        // Predicated region
        $region37: #{tpu_custom_call.1} parent=11 // pred_check
          %p464 = pneg %p232
        $region38: #{tpu_custom_call.1} parent=11 // pred_check_branch
          %466 = sbr.rel (%p464) target = $region40
        $region39: #{tpu_custom_call.1} parent=11 // pred_region
          %468 = vsyncadd [#allocation15], 0
          %s470 = sshll.u32 %s8, 4
          %s471 = int_to_ptr.hbm [resolvable:$true] %s470
          %s472 = sshll.u32 [#allocation16], 4
          %s473 = int_to_ptr.vmem [resolvable:$true] %s472
          %475 = dma.hbm_to_vmem [thread:$0]  %s471, 16, %s473, [#allocation15]
        $region40: #{tpu_custom_call.1} parent=11 // pred_fallthru
          _
        // Predicated region
        $region41: #{tpu_custom_call.1} parent=11 // pred_check
          %p476 = pneg %p253
        $region42: #{tpu_custom_call.1} parent=11 // pred_check_branch
          %478 = sbr.rel (%p476) target = $region44
        $region43: #{tpu_custom_call.1} parent=11 // pred_region
          %480 = vsyncadd [#allocation18], 0
          %s482 = sshll.u32 %s9, 4
          %s483 = int_to_ptr.hbm [resolvable:$true] %s482
          %s484 = sshll.u32 [#allocation17], 4
          %s485 = int_to_ptr.vmem [resolvable:$true] %s484
          %487 = dma.hbm_to_vmem [thread:$0]  %s483, 128, %s485, [#allocation18]
        $region44: #{tpu_custom_call.1} parent=11 // pred_fallthru
          _
        // Predicated region
        $region45: #{tpu_custom_call.1} parent=11 // pred_check
          %p488 = pneg %p274
        $region46: #{tpu_custom_call.1} parent=11 // pred_check_branch
          %490 = sbr.rel (%p488) target = $region48
        $region47: #{tpu_custom_call.1} parent=11 // pred_region
          %492 = vsyncadd [#allocation18], 0
          %s494 = sshll.u32 %s10, 4
          %s495 = int_to_ptr.hbm [resolvable:$true] %s494
          %s496 = sshll.u32 [#allocation19], 4
          %s497 = int_to_ptr.vmem [resolvable:$true] %s496
          %499 = dma.hbm_to_vmem [thread:$0]  %s495, 16, %s497, [#allocation18]
        $region48: #{tpu_custom_call.1} parent=11 // pred_fallthru
          _
        // Predicated region
        $region49: #{tpu_custom_call.1} parent=11 // pred_check
          %p500 = pneg %p295
        $region50: #{tpu_custom_call.1} parent=11 // pred_check_branch
          %502 = sbr.rel (%p500) target = $region52
        $region51: #{tpu_custom_call.1} parent=11 // pred_region
          %504 = vsyncadd [#allocation21], 0
          %s505 = sshll.u32 %s11, 4
          %s506 = int_to_ptr.hbm [resolvable:$true] %s505
          %s507 = sshll.u32 [#allocation20], 4
          %s508 = int_to_ptr.vmem [resolvable:$true] %s507
          %513 = dma.hbm_to_vmem [thread:$0]  %s506, 1024, %s508, [#allocation21], 512, 512, 32
        $region52: #{tpu_custom_call.1} parent=11 // pred_fallthru
          _
        // Predicated region
        $region53: #{tpu_custom_call.1} parent=11 // pred_check
          %p514 = pneg %p316
        $region54: #{tpu_custom_call.1} parent=11 // pred_check_branch
          %516 = sbr.rel (%p514) target = $region56
        $region55: #{tpu_custom_call.1} parent=11 // pred_region
          %518 = vsyncadd [#allocation21], 0
          %s520 = sshll.u32 %s12, 4
          %s521 = int_to_ptr.hbm [resolvable:$true] %s520
          %s522 = sshll.u32 [#allocation22], 4
          %s523 = int_to_ptr.vmem [resolvable:$true] %s522
          %525 = dma.hbm_to_vmem [thread:$0]  %s521, 64, %s523, [#allocation21]
        $region56: #{tpu_custom_call.1} parent=11 // pred_fallthru
          _
        // Predicated region
        $region57: #{tpu_custom_call.1} parent=11 // pred_check
          %p526 = pneg %p337
        $region58: #{tpu_custom_call.1} parent=11 // pred_check_branch
          %528 = sbr.rel (%p526) target = $region60
        $region59: #{tpu_custom_call.1} parent=11 // pred_region
          %530 = vsyncadd [#allocation24], 0
          %s531 = sshll.u32 %s13, 4
          %s532 = int_to_ptr.hbm [resolvable:$true] %s531
          %s533 = sshll.u32 [#allocation23], 4
          %s534 = int_to_ptr.vmem [resolvable:$true] %s533
          %539 = dma.hbm_to_vmem [thread:$0]  %s532, 2048, %s534, [#allocation24], 512, 512, 32
        $region60: #{tpu_custom_call.1} parent=11 // pred_fallthru
          _
        // Predicated region
        $region61: #{tpu_custom_call.1} parent=11 // pred_check
          %p540 = pneg %p358
        $region62: #{tpu_custom_call.1} parent=11 // pred_check_branch
          %542 = sbr.rel (%p540) target = $region64
        $region63: #{tpu_custom_call.1} parent=11 // pred_region
          %544 = vsyncadd [#allocation24], 0
          %s545 = sshll.u32 %s14, 4
          %s546 = int_to_ptr.hbm [resolvable:$true] %s545
          %s547 = sshll.u32 [#allocation25], 4
          %s548 = int_to_ptr.vmem [resolvable:$true] %s547
          %553 = dma.hbm_to_vmem [thread:$0]  %s546, 65536, %s548, [#allocation24], 128, 128, 8
        $region64: #{tpu_custom_call.1} parent=11 // pred_fallthru
          _
      $region12: #{tpu_custom_call.1} parent=5 // pred_fallthru
        _
      %p554 = scmp.lt.s32.totalorder %s33, 2
      // Predicated region
      $region65: #{tpu_custom_call.1} parent=5 // pred_check
        %p555 = pneg %p554
      $region66: #{tpu_custom_call.1} parent=5 // pred_check_branch
        %557 = sbr.rel (%p555) target = $region68
      $region67: #{tpu_custom_call.1} parent=5 // pred_region
        // Predicated region
        $region69: #{tpu_custom_call.1} parent=67 // pred_check
          %p558 = pneg %p53
        $region70: #{tpu_custom_call.1} parent=67 // pred_check_branch
          %560 = sbr.rel (%p558) target = $region72
        $region71: #{tpu_custom_call.1} parent=67 // pred_region
          %s561 = sand.u32 %s43, 1
          %s562 = scalar_lea.sflag [#allocation5], %s561
          %s563 = sand.u32 %s43, 1
          %s564 = smul.addr %s563, 8
          %s565 = scalar_lea.vmem [#allocation4], %s564
          %567 = vsyncadd %s562, 0
          %s568 = smul.addr %s33, 8
          %s569 = scalar_lea.hbm %s0, %s568
          %s571 = sshll.u32 %s569, 4
          %s572 = int_to_ptr.hbm [resolvable:$true] %s571
          %s573 = sshll.u32 %s565, 4
          %s574 = int_to_ptr.vmem [resolvable:$true] %s573
          %576 = dma.hbm_to_vmem [thread:$0]  %s572, 128, %s574, %s562
        $region72: #{tpu_custom_call.1} parent=67 // pred_fallthru
          _
        // Predicated region
        $region73: #{tpu_custom_call.1} parent=67 // pred_check
          %p577 = pneg %p79
        $region74: #{tpu_custom_call.1} parent=67 // pred_check_branch
          %579 = sbr.rel (%p577) target = $region76
        $region75: #{tpu_custom_call.1} parent=67 // pred_region
          %s580 = sand.u32 %s69, 1
          %s581 = sand.u32 %s69, 1
          %s582 = smul.addr %s581, 64
          %s583 = scalar_lea.vmem [#allocation7], %s582
          %s584 = smul.addr %s33, 8
          %s585 = scalar_lea.vmem %s1, %s584
          // Predicated region
          $region77: #{tpu_custom_call.1} parent=75 // pred_check
            _
          $region78: #{tpu_custom_call.1} parent=75 // pred_check_branch
            %587 = sbr.rel (0) target = $region80
          $region79: #{tpu_custom_call.1} parent=75 // pred_region
            // Predicated region
            $region81: #{tpu_custom_call.1} parent=79 // pred_check
              _
            $region82: #{tpu_custom_call.1} parent=79 // pred_check_branch
              %589 = sbr.rel (0) target = $region84
            $region83: #{tpu_custom_call.1} parent=79 // pred_region
              // Predicated region
              $region96: #{tpu_custom_call.1} parent=83 // pred_check
                _
              $region97: #{tpu_custom_call.1} parent=83 // pred_check_branch
                %619 = sbr.rel (0) target = $region99
              $region98: #{tpu_custom_call.1} parent=83 // pred_region
                loop: start=0, step=1, limit=1
                $region100: #{tpu_custom_call.1} parent=98 // loop_pre_header
                  _
                $region101: #{tpu_custom_call.1} parent=98 // loop_header
                  %s621 = sphi 0, %s625
                  %p622 = scmp.ge.s32.totalorder %s621, 1
                  %s626 = sphi %s585, %s585
                  %s627 = sphi %s583, %s583
                $region102: #{tpu_custom_call.1} parent=98 // loop_header_branch
                  %624 = sbr.rel (%p622) target = $region106
                $region103: #{tpu_custom_call.1} parent=98 // loop_body
                  %v628 = vld [vmem:[%s626] sm:$0xff]
                  %629 = vst [vmem:[%s627] sm:$0xff] %v628
                  %v630 = vld [vmem:[%s626 + $0x10] sm:$0xff]
                  %631 = vst [vmem:[%s627 + $0x8] sm:$0xff] %v630
                  %v632 = vld [vmem:[%s626 + $0x20] sm:$0xff]
                  %633 = vst [vmem:[%s627 + $0x10] sm:$0xff] %v632
                  %v634 = vld [vmem:[%s626 + $0x30] sm:$0xff]
                  %635 = vst [vmem:[%s627 + $0x18] sm:$0xff] %v634
                  %v636 = vld [vmem:[%s626 + $0x40] sm:$0xff]
                  %637 = vst [vmem:[%s627 + $0x20] sm:$0xff] %v636
                  %v638 = vld [vmem:[%s626 + $0x50] sm:$0xff]
                  %639 = vst [vmem:[%s627 + $0x28] sm:$0xff] %v638
                  %v640 = vld [vmem:[%s626 + $0x60] sm:$0xff]
                  %641 = vst [vmem:[%s627 + $0x30] sm:$0xff] %v640
                  %v642 = vld [vmem:[%s626 + $0x70] sm:$0xff]
                  %643 = vst [vmem:[%s627 + $0x38] sm:$0xff] %v642
                $region104: #{tpu_custom_call.1} parent=98 // loop_footer
                  %s625 = sadd.s32 1, %s621
                $region105: #{tpu_custom_call.1} parent=98 // loop_footer_branch
                  %620 = sbr.rel target = $region101
                $region106: #{tpu_custom_call.1} parent=98 // loop_exit
                  _
              $region99: #{tpu_custom_call.1} parent=83 // pred_fallthru
                _
              // Predicated region
              $region107: #{tpu_custom_call.1} parent=83 // pred_check
                _
              $region108: #{tpu_custom_call.1} parent=83 // pred_check_branch
                %645 = sbr.rel target = $region110
              $region109: #{tpu_custom_call.1} parent=83 // pred_region
                _
              $region110: #{tpu_custom_call.1} parent=83 // pred_fallthru
                _
            $region84: #{tpu_custom_call.1} parent=79 // pred_fallthru
              _
            // Predicated region
            $region85: #{tpu_custom_call.1} parent=79 // pred_check
              _
            $region86: #{tpu_custom_call.1} parent=79 // pred_check_branch
              %591 = sbr.rel target = $region88
            $region87: #{tpu_custom_call.1} parent=79 // pred_region
              %s593 = ssub.s32 256, 1
              loop: start=0, step=1, limit=1
              $region89: #{tpu_custom_call.1} parent=87 // loop_pre_header
                _
              $region90: #{tpu_custom_call.1} parent=87 // loop_header
                %s595 = sphi 0, %s599
                %p596 = scmp.ge.s32.totalorder %s595, 1
                %s600 = sphi %s585, %s585
                %s601 = sphi %s583, %s583
              $region91: #{tpu_custom_call.1} parent=87 // loop_header_branch
                %598 = sbr.rel (%p596) target = $region95
              $region92: #{tpu_custom_call.1} parent=87 // loop_body
                %v602 = vld [vmem:[%s600] sm:%s593]
                %603 = vst [vmem:[%s601] sm:%s593] %v602
                %v604 = vld [vmem:[%s600 + $0x10] sm:%s593]
                %605 = vst [vmem:[%s601 + $0x8] sm:%s593] %v604
                %v606 = vld [vmem:[%s600 + $0x20] sm:%s593]
                %607 = vst [vmem:[%s601 + $0x10] sm:%s593] %v606
                %v608 = vld [vmem:[%s600 + $0x30] sm:%s593]
                %609 = vst [vmem:[%s601 + $0x18] sm:%s593] %v608
                %v610 = vld [vmem:[%s600 + $0x40] sm:%s593]
                %611 = vst [vmem:[%s601 + $0x20] sm:%s593] %v610
                %v612 = vld [vmem:[%s600 + $0x50] sm:%s593]
                %613 = vst [vmem:[%s601 + $0x28] sm:%s593] %v612
                %v614 = vld [vmem:[%s600 + $0x60] sm:%s593]
                %615 = vst [vmem:[%s601 + $0x30] sm:%s593] %v614
                %v616 = vld [vmem:[%s600 + $0x70] sm:%s593]
                %617 = vst [vmem:[%s601 + $0x38] sm:%s593] %v616
              $region93: #{tpu_custom_call.1} parent=87 // loop_footer
                %s599 = sadd.s32 1, %s595
              $region94: #{tpu_custom_call.1} parent=87 // loop_footer_branch
                %594 = sbr.rel target = $region90
              $region95: #{tpu_custom_call.1} parent=87 // loop_exit
                _
            $region88: #{tpu_custom_call.1} parent=79 // pred_fallthru
              _
          $region80: #{tpu_custom_call.1} parent=75 // pred_fallthru
            _
          %646 = vnop
        $region76: #{tpu_custom_call.1} parent=67 // pred_fallthru
          _
      $region68: #{tpu_custom_call.1} parent=5 // pred_fallthru
        _
      %p647 = scmp.le.s32.totalorder 1, %s33
      %p648 = scmp.lt.s32.totalorder %s33, 3
      %p649 = pnand %p647, %p648
      %p650 = pneg %p649
      // Predicated region
      $region111: #{tpu_custom_call.1} parent=5 // pred_check
        _
      $region112: #{tpu_custom_call.1} parent=5 // pred_check_branch
        %652 = sbr.rel (%p649) target = $region114
      $region113: #{tpu_custom_call.1} parent=5 // pred_region
        %s653 = ssub.s32 %s33, 1
        %s654 = sand.u32 %s46, 1
        %s655 = scalar_lea.sflag [#allocation5], %s654
        %s656 = sand.u32 %s46, 1
        %s657 = smul.addr %s656, 8
        %s658 = scalar_lea.vmem [#allocation4], %s657
        // Predicated region
        $region115: #{tpu_custom_call.1} parent=113 // pred_check
          %p659 = pneg %p59
        $region116: #{tpu_custom_call.1} parent=113 // pred_check_branch
          %661 = sbr.rel (%p659) target = $region118
        $region117: #{tpu_custom_call.1} parent=113 // pred_region
          %663 = dma.done %s655, 128
        $region118: #{tpu_custom_call.1} parent=113 // pred_fallthru
          _
        %s664 = sand.u32 %s72, 1
        %s665 = sand.u32 %s72, 1
        %s666 = smul.addr %s665, 64
        %s667 = scalar_lea.vmem [#allocation7], %s666
        // Predicated region
        $region119: #{tpu_custom_call.1} parent=113 // pred_check
          %p668 = pneg %p85
        $region120: #{tpu_custom_call.1} parent=113 // pred_check_branch
          %670 = sbr.rel (%p668) target = $region122
        $region121: #{tpu_custom_call.1} parent=113 // pred_region
          _
        $region122: #{tpu_custom_call.1} parent=113 // pred_fallthru
          _
        // Predicated region
        $region123: #{tpu_custom_call.1} parent=113 // pred_check
          %p671 = pneg %p106
        $region124: #{tpu_custom_call.1} parent=113 // pred_check_branch
          %673 = sbr.rel (%p671) target = $region126
        $region125: #{tpu_custom_call.1} parent=113 // pred_region
          %675 = dma.done [#allocation9], 64
        $region126: #{tpu_custom_call.1} parent=113 // pred_fallthru
          _
        // Predicated region
        $region127: #{tpu_custom_call.1} parent=113 // pred_check
          %p676 = pneg %p148
        $region128: #{tpu_custom_call.1} parent=113 // pred_check_branch
          %678 = sbr.rel (%p676) target = $region130
        $region129: #{tpu_custom_call.1} parent=113 // pred_region
          %680 = dma.done [#allocation9], 16
        $region130: #{tpu_custom_call.1} parent=113 // pred_fallthru
          _
        // Predicated region
        $region131: #{tpu_custom_call.1} parent=113 // pred_check
          %p681 = pneg %p169
        $region132: #{tpu_custom_call.1} parent=113 // pred_check_branch
          %683 = sbr.rel (%p681) target = $region134
        $region133: #{tpu_custom_call.1} parent=113 // pred_region
          %685 = dma.done [#allocation12], 256
        $region134: #{tpu_custom_call.1} parent=113 // pred_fallthru
          _
        // Predicated region
        $region135: #{tpu_custom_call.1} parent=113 // pred_check
          %p686 = pneg %p190
        $region136: #{tpu_custom_call.1} parent=113 // pred_check_branch
          %688 = sbr.rel (%p686) target = $region138
        $region137: #{tpu_custom_call.1} parent=113 // pred_region
          %690 = dma.done [#allocation12], 16
        $region138: #{tpu_custom_call.1} parent=113 // pred_fallthru
          _
        // Predicated region
        $region139: #{tpu_custom_call.1} parent=113 // pred_check
          %p691 = pneg %p211
        $region140: #{tpu_custom_call.1} parent=113 // pred_check_branch
          %693 = sbr.rel (%p691) target = $region142
        $region141: #{tpu_custom_call.1} parent=113 // pred_region
          %695 = dma.done [#allocation15], 64
        $region142: #{tpu_custom_call.1} parent=113 // pred_fallthru
          _
        // Predicated region
        $region143: #{tpu_custom_call.1} parent=113 // pred_check
          %p696 = pneg %p232
        $region144: #{tpu_custom_call.1} parent=113 // pred_check_branch
          %698 = sbr.rel (%p696) target = $region146
        $region145: #{tpu_custom_call.1} parent=113 // pred_region
          %700 = dma.done [#allocation15], 16
        $region146: #{tpu_custom_call.1} parent=113 // pred_fallthru
          _
        // Predicated region
        $region147: #{tpu_custom_call.1} parent=113 // pred_check
          %p701 = pneg %p253
        $region148: #{tpu_custom_call.1} parent=113 // pred_check_branch
          %703 = sbr.rel (%p701) target = $region150
        $region149: #{tpu_custom_call.1} parent=113 // pred_region
          %705 = dma.done [#allocation18], 128
        $region150: #{tpu_custom_call.1} parent=113 // pred_fallthru
          _
        // Predicated region
        $region151: #{tpu_custom_call.1} parent=113 // pred_check
          %p706 = pneg %p274
        $region152: #{tpu_custom_call.1} parent=113 // pred_check_branch
          %708 = sbr.rel (%p706) target = $region154
        $region153: #{tpu_custom_call.1} parent=113 // pred_region
          %710 = dma.done [#allocation18], 16
        $region154: #{tpu_custom_call.1} parent=113 // pred_fallthru
          _
        // Predicated region
        $region155: #{tpu_custom_call.1} parent=113 // pred_check
          %p711 = pneg %p295
        $region156: #{tpu_custom_call.1} parent=113 // pred_check_branch
          %713 = sbr.rel (%p711) target = $region158
        $region157: #{tpu_custom_call.1} parent=113 // pred_region
          %715 = dma.done [#allocation21], 1024
        $region158: #{tpu_custom_call.1} parent=113 // pred_fallthru
          _
        // Predicated region
        $region159: #{tpu_custom_call.1} parent=113 // pred_check
          %p716 = pneg %p316
        $region160: #{tpu_custom_call.1} parent=113 // pred_check_branch
          %718 = sbr.rel (%p716) target = $region162
        $region161: #{tpu_custom_call.1} parent=113 // pred_region
          %720 = dma.done [#allocation21], 64
        $region162: #{tpu_custom_call.1} parent=113 // pred_fallthru
          _
        // Predicated region
        $region163: #{tpu_custom_call.1} parent=113 // pred_check
          %p721 = pneg %p337
        $region164: #{tpu_custom_call.1} parent=113 // pred_check_branch
          %723 = sbr.rel (%p721) target = $region166
        $region165: #{tpu_custom_call.1} parent=113 // pred_region
          %725 = dma.done [#allocation24], 2048
        $region166: #{tpu_custom_call.1} parent=113 // pred_fallthru
          _
        // Predicated region
        $region167: #{tpu_custom_call.1} parent=113 // pred_check
          %p726 = pneg %p358
        $region168: #{tpu_custom_call.1} parent=113 // pred_check_branch
          %728 = sbr.rel (%p726) target = $region170
        $region169: #{tpu_custom_call.1} parent=113 // pred_region
          %730 = dma.done [#allocation24], 65536
        $region170: #{tpu_custom_call.1} parent=113 // pred_fallthru
          _
        %s731 = sand.u32 %s46, 1
        %s732 = scalar_lea.sflag [#allocation5], %s731
        %s733 = sand.u32 %s46, 1
        %s734 = smul.addr %s733, 8
        %s735 = scalar_lea.vmem [#allocation4], %s734
        %p736 = pneg %p59
        %p737 = pneg %p56
        %s738 = sand.u32 %s72, 1
        %s739 = sand.u32 %s72, 1
        %s740 = smul.addr %s739, 64
        %s741 = scalar_lea.vmem [#allocation7], %s740
        %p742 = pneg %p85
        %p743 = pneg %p82
        %p744 = pneg %p106
        %p745 = pneg %p103
        %p746 = pneg %p127
        %p747 = pneg %p124
        %p748 = pneg %p148
        %p749 = pneg %p145
        %p750 = pneg %p169
        %p751 = pneg %p166
        %p752 = pneg %p190
        %p753 = pneg %p187
        %p754 = pneg %p211
        %p755 = pneg %p208
        %p756 = pneg %p232
        %p757 = pneg %p229
        %p758 = pneg %p253
        %p759 = pneg %p250
        %p760 = pneg %p274
        %p761 = pneg %p271
        %p762 = pneg %p295
        %p763 = pneg %p292
        %p764 = pneg %p316
        %p765 = pneg %p313
        %p766 = pneg %p337
        %p767 = pneg %p334
        %p768 = pneg %p358
        %p769 = pneg %p355
        %p770 = pneg %p384
        %p771 = pneg %p381
        %s772 = sand.u32 %s371, 1
        %s773 = scalar_lea.sflag [#allocation6], %s772
        %s774 = sand.u32 %s371, 1
        %s775 = smul.addr %s774, 8
        %s776 = scalar_lea.vmem [#allocation26], %s775
        %v777 = vld [vmem:[%s667] sm:$0xff]
        %v778 = vld [vmem:[%s667 + $0x8] sm:$0xff]
        %v779 = vld [vmem:[%s667 + $0x10] sm:$0xff]
        %v780 = vld [vmem:[%s667 + $0x18] sm:$0xff]
        %v781 = vld [vmem:[%s667 + $0x20] sm:$0xff]
        %v782 = vld [vmem:[%s667 + $0x28] sm:$0xff]
        %v783 = vld [vmem:[%s667 + $0x30] sm:$0xff]
        %v784 = vld [vmem:[%s667 + $0x38] sm:$0xff]
        %v785 = vld [vmem:[#allocation8] sm:$0x7]
        %vm786 = vcmask 23552
        %v788 = vsel %vm786, %v777, 0
        %v791 = vsel %vm786, %v778, 0
        %v794 = vsel %vm786, %v779, 0
        %v797 = vsel %vm786, %v780, 0
        %v800 = vsel %vm786, %v781, 0
        %v803 = vsel %vm786, %v782, 0
        %v806 = vsel %vm786, %v783, 0
        %v809 = vsel %vm786, %v784, 0
        %vm811 = vcmask 1042432
        %v813 = vsel %vm811, %v785, 0
        %815 = vmatpush.msra.mxu0 0.0
        %816 = vmatpush.msra.mxu0 0.0
        %817 = vmatpush.msra.mxu0 0.0
        %818 = vmatpush.msra.mxu0 0.0
        %819 = vmatpush.msra.mxu0 0.0
        %820 = vmatpush.msra.mxu0 0.0
        %821 = vmatpush.msra.mxu0 0.0
        %822 = vmatpush.msra.mxu0 0.0
        %823 = vmatpush.msra.mxu0 0.0
        %824 = vmatpush.msra.mxu0 0.0
        %825 = vmatpush.msra.mxu0 0.0
        %826 = vmatpush.msra.mxu0 0.0
        %827 = vmatpush.msra.mxu0 0.0
        %828 = vmatpush.msra.mxu0 0.0
        %829 = vmatpush.msra.mxu0 0.0
        %830 = vmatpush.msra.mxu0 %v813
        %831 = vmatmul.f32.gmra.mxu0 %v788
        %v832 = vpop.f32.mrf.mxu0
        %v833 = vadd.f32 0.0, %v832
        %834 = vmatmul.f32.gmra.mxu0 %v791
        %v835 = vpop.f32.mrf.mxu0
        %v836 = vadd.f32 0.0, %v835
        %837 = vmatmul.f32.gmra.mxu0 %v794
        %v838 = vpop.f32.mrf.mxu0
        %v839 = vadd.f32 0.0, %v838
        %840 = vmatmul.f32.gmra.mxu0 %v797
        %v841 = vpop.f32.mrf.mxu0
        %v842 = vadd.f32 0.0, %v841
        %843 = vmatmul.f32.gmra.mxu0 %v800
        %v844 = vpop.f32.mrf.mxu0
        %v845 = vadd.f32 0.0, %v844
        %846 = vmatmul.f32.gmra.mxu0 %v803
        %v847 = vpop.f32.mrf.mxu0
        %v848 = vadd.f32 0.0, %v847
        %849 = vmatmul.f32.gmra.mxu0 %v806
        %v850 = vpop.f32.mrf.mxu0
        %v851 = vadd.f32 0.0, %v850
        %852 = vmatmul.f32.gmra.mxu0 %v809
        %v853 = vpop.f32.mrf.mxu0
        %v854 = vadd.f32 0.0, %v853
        %855 = vdwg.mxu0
        %v856 = vld [vmem:[%s658] sm:$0xff]
        %v857 = vadd.f32 %v833, %v856
        %v858 = vadd.f32 %v836, %v856
        %v859 = vadd.f32 %v839, %v856
        %v860 = vadd.f32 %v842, %v856
        %v861 = vadd.f32 %v845, %v856
        %v862 = vadd.f32 %v848, %v856
        %v863 = vadd.f32 %v851, %v856
        %v864 = vadd.f32 %v854, %v856
        %v865 = vmax.f32 %v857, 0.0
        %v866 = vmax.f32 %v858, 0.0
        %v867 = vmax.f32 %v859, 0.0
        %v868 = vmax.f32 %v860, 0.0
        %v869 = vmax.f32 %v861, 0.0
        %v870 = vmax.f32 %v862, 0.0
        %v871 = vmax.f32 %v863, 0.0
        %v872 = vmax.f32 %v864, 0.0
        %v873 = vld [vmem:[%s3] sm:$0xff]
        %v874 = vld [vmem:[%s3 + $0x8] sm:$0xff]
        %v875 = vld [vmem:[%s3 + $0x10] sm:$0xff]
        %v876 = vld [vmem:[%s3 + $0x18] sm:$0xff]
        %v877 = vld [vmem:[#allocation10] sm:$0x1]
        %v879 = vperm.slane %v877, 0
        %vm881 = vcmask 261120
        %v883 = vsel %vm881, %v865, 0
        %v886 = vsel %vm881, %v866, 0
        %v889 = vsel %vm881, %v867, 0
        %v892 = vsel %vm881, %v868, 0
        %v895 = vsel %vm881, %v869, 0
        %v898 = vsel %vm881, %v870, 0
        %v901 = vsel %vm881, %v871, 0
        %v904 = vsel %vm881, %v872, 0
        %906 = vmatpush.msra.mxu0 0.0
        %907 = vmatpush.msra.mxu0 0.0
        %908 = vmatpush.msra.mxu0 0.0
        %909 = vmatpush.msra.mxu0 0.0
        %910 = vmatpush.msra.mxu0 0.0
        %911 = vmatpush.msra.mxu0 0.0
        %912 = vmatpush.msra.mxu0 0.0
        %913 = vmatpush.msra.mxu0 0.0
        %914 = vmatpush.msra.mxu0 0.0
        %915 = vmatpush.msra.mxu0 0.0
        %916 = vmatpush.msra.mxu0 0.0
        %917 = vmatpush.msra.mxu0 0.0
        %918 = vmatpush.msra.mxu0 %v876
        %919 = vmatpush.msra.mxu0 %v875
        %920 = vmatpush.msra.mxu0 %v874
        %921 = vmatpush.msra.mxu0 %v873
        %922 = vmatmul.f32.gmra.mxu0 %v883
        %v923 = vpop.f32.mrf.mxu0
        %v924 = vadd.f32 %v879, %v923
        %925 = vmatmul.f32.gmra.mxu0 %v886
        %v926 = vpop.f32.mrf.mxu0
        %v927 = vadd.f32 %v879, %v926
        %928 = vmatmul.f32.gmra.mxu0 %v889
        %v929 = vpop.f32.mrf.mxu0
        %v930 = vadd.f32 %v879, %v929
        %931 = vmatmul.f32.gmra.mxu0 %v892
        %v932 = vpop.f32.mrf.mxu0
        %v933 = vadd.f32 %v879, %v932
        %934 = vmatmul.f32.gmra.mxu0 %v895
        %v935 = vpop.f32.mrf.mxu0
        %v936 = vadd.f32 %v879, %v935
        %937 = vmatmul.f32.gmra.mxu0 %v898
        %v938 = vpop.f32.mrf.mxu0
        %v939 = vadd.f32 %v879, %v938
        %940 = vmatmul.f32.gmra.mxu0 %v901
        %v941 = vpop.f32.mrf.mxu0
        %v942 = vadd.f32 %v879, %v941
        %943 = vmatmul.f32.gmra.mxu0 %v904
        %v944 = vpop.f32.mrf.mxu0
        %v945 = vadd.f32 %v879, %v944
        %946 = vdwg.mxu0
        %v947 = vmax.f32 %v924, 0.0
        %v948 = vmax.f32 %v927, 0.0
        %v949 = vmax.f32 %v930, 0.0
        %v950 = vmax.f32 %v933, 0.0
        %v951 = vmax.f32 %v936, 0.0
        %v952 = vmax.f32 %v939, 0.0
        %v953 = vmax.f32 %v942, 0.0
        %v954 = vmax.f32 %v945, 0.0
        %v955 = vld [vmem:[#allocation11] sm:$0xff]
        %v956 = vld [vmem:[#allocation11 + $0x8] sm:$0xff]
        %v957 = vld [vmem:[#allocation13] sm:$0x1]
        %v959 = vperm.slane %v957, 0
        %vm961 = vcmask 130048
        %v963 = vsel %vm961, %v947, 0
        %v966 = vsel %vm961, %v948, 0
        %v969 = vsel %vm961, %v949, 0
        %v972 = vsel %vm961, %v950, 0
        %v975 = vsel %vm961, %v951, 0
        %v978 = vsel %vm961, %v952, 0
        %v981 = vsel %vm961, %v953, 0
        %v984 = vsel %vm961, %v954, 0
        %986 = vmatpush.msra.mxu0 0.0
        %987 = vmatpush.msra.mxu0 0.0
        %988 = vmatpush.msra.mxu0 0.0
        %989 = vmatpush.msra.mxu0 0.0
        %990 = vmatpush.msra.mxu0 0.0
        %991 = vmatpush.msra.mxu0 0.0
        %992 = vmatpush.msra.mxu0 0.0
        %993 = vmatpush.msra.mxu0 0.0
        %994 = vmatpush.msra.mxu0 0.0
        %995 = vmatpush.msra.mxu0 0.0
        %996 = vmatpush.msra.mxu0 0.0
        %997 = vmatpush.msra.mxu0 0.0
        %998 = vmatpush.msra.mxu0 0.0
        %999 = vmatpush.msra.mxu0 0.0
        %1000 = vmatpush.msra.mxu0 %v956
        %1001 = vmatpush.msra.mxu0 %v955
        %1002 = vmatmul.f32.gmra.mxu0 %v963
        %v1003 = vpop.f32.mrf.mxu0
        %v1004 = vadd.f32 %v959, %v1003
        %1005 = vmatmul.f32.gmra.mxu0 %v966
        %v1006 = vpop.f32.mrf.mxu0
        %v1007 = vadd.f32 %v959, %v1006
        %1008 = vmatmul.f32.gmra.mxu0 %v969
        %v1009 = vpop.f32.mrf.mxu0
        %v1010 = vadd.f32 %v959, %v1009
        %1011 = vmatmul.f32.gmra.mxu0 %v972
        %v1012 = vpop.f32.mrf.mxu0
        %v1013 = vadd.f32 %v959, %v1012
        %1014 = vmatmul.f32.gmra.mxu0 %v975
        %v1015 = vpop.f32.mrf.mxu0
        %v1016 = vadd.f32 %v959, %v1015
        %1017 = vmatmul.f32.gmra.mxu0 %v978
        %v1018 = vpop.f32.mrf.mxu0
        %v1019 = vadd.f32 %v959, %v1018
        %1020 = vmatmul.f32.gmra.mxu0 %v981
        %v1021 = vpop.f32.mrf.mxu0
        %v1022 = vadd.f32 %v959, %v1021
        %1023 = vmatmul.f32.gmra.mxu0 %v984
        %v1024 = vpop.f32.mrf.mxu0
        %v1025 = vadd.f32 %v959, %v1024
        %1026 = vdwg.mxu0
        %v1027 = vmax.f32 %v1004, 0.0
        %v1028 = vmax.f32 %v1007, 0.0
        %v1029 = vmax.f32 %v1010, 0.0
        %v1030 = vmax.f32 %v1013, 0.0
        %v1031 = vmax.f32 %v1016, 0.0
        %v1032 = vmax.f32 %v1019, 0.0
        %v1033 = vmax.f32 %v1022, 0.0
        %v1034 = vmax.f32 %v1025, 0.0
        %v1035 = vld [vmem:[#allocation23] sm:$0xff]
        %v1036 = vld [vmem:[#allocation23 + $0x8] sm:$0xff]
        %v1037 = vld [vmem:[#allocation23 + $0x10] sm:$0xff]
        %v1038 = vld [vmem:[#allocation23 + $0x18] sm:$0xff]
        %v1039 = vld [vmem:[#allocation23 + $0x20] sm:$0xff]
        %v1040 = vld [vmem:[#allocation23 + $0x28] sm:$0xff]
        %v1041 = vld [vmem:[#allocation23 + $0x30] sm:$0xff]
        %v1042 = vld [vmem:[#allocation23 + $0x38] sm:$0xff]
        %v1043 = vld [vmem:[#allocation23 + $0x40] sm:$0xff]
        %v1044 = vld [vmem:[#allocation23 + $0x48] sm:$0xff]
        %v1045 = vld [vmem:[#allocation23 + $0x50] sm:$0xff]
        %v1046 = vld [vmem:[#allocation23 + $0x58] sm:$0xff]
        %v1047 = vld [vmem:[#allocation23 + $0x60] sm:$0xff]
        %v1048 = vld [vmem:[#allocation23 + $0x68] sm:$0xff]
        %v1049 = vld [vmem:[#allocation23 + $0x70] sm:$0xff]
        %v1050 = vld [vmem:[#allocation23 + $0x78] sm:$0xff]
        %v1052 = vsel %vm881, %v1027, 0
        %v1055 = vsel %vm881, %v1028, 0
        %v1058 = vsel %vm881, %v1029, 0
        %v1061 = vsel %vm881, %v1030, 0
        %v1064 = vsel %vm881, %v1031, 0
        %v1067 = vsel %vm881, %v1032, 0
        %v1070 = vsel %vm881, %v1033, 0
        %v1073 = vsel %vm881, %v1034, 0
        %1075 = vmatpush.msra.mxu0 0.0
        %1076 = vmatpush.msra.mxu0 0.0
        %1077 = vmatpush.msra.mxu0 0.0
        %1078 = vmatpush.msra.mxu0 0.0
        %1079 = vmatpush.msra.mxu0 0.0
        %1080 = vmatpush.msra.mxu0 0.0
        %1081 = vmatpush.msra.mxu0 0.0
        %1082 = vmatpush.msra.mxu0 0.0
        %1083 = vmatpush.msra.mxu0 0.0
        %1084 = vmatpush.msra.mxu0 0.0
        %1085 = vmatpush.msra.mxu0 0.0
        %1086 = vmatpush.msra.mxu0 0.0
        %1087 = vmatpush.msra.mxu0 %v1047
        %1088 = vmatpush.msra.mxu0 %v1043
        %1089 = vmatpush.msra.mxu0 %v1039
        %1090 = vmatpush.msra.mxu0 %v1035
        %1091 = vmatmul.f32.gmra.mxu0 %v1052
        %v1092 = vpop.f32.mrf.mxu0
        %v1093 = vadd.f32 0.0, %v1092
        %1094 = vmatmul.f32.gmra.mxu0 %v1055
        %v1095 = vpop.f32.mrf.mxu0
        %v1096 = vadd.f32 0.0, %v1095
        %1097 = vmatmul.f32.gmra.mxu0 %v1058
        %v1098 = vpop.f32.mrf.mxu0
        %v1099 = vadd.f32 0.0, %v1098
        %1100 = vmatmul.f32.gmra.mxu0 %v1061
        %v1101 = vpop.f32.mrf.mxu0
        %v1102 = vadd.f32 0.0, %v1101
        %1103 = vmatmul.f32.gmra.mxu0 %v1064
        %v1104 = vpop.f32.mrf.mxu0
        %v1105 = vadd.f32 0.0, %v1104
        %1106 = vmatmul.f32.gmra.mxu0 %v1067
        %v1107 = vpop.f32.mrf.mxu0
        %v1108 = vadd.f32 0.0, %v1107
        %1109 = vmatmul.f32.gmra.mxu0 %v1070
        %v1110 = vpop.f32.mrf.mxu0
        %v1111 = vadd.f32 0.0, %v1110
        %1112 = vmatmul.f32.gmra.mxu0 %v1073
        %v1113 = vpop.f32.mrf.mxu0
        %v1114 = vadd.f32 0.0, %v1113
        %1115 = vdwg.mxu0
        %1116 = vmatpush.msra.mxu0 0.0
        %1117 = vmatpush.msra.mxu0 0.0
        %1118 = vmatpush.msra.mxu0 0.0
        %1119 = vmatpush.msra.mxu0 0.0
        %1120 = vmatpush.msra.mxu0 0.0
        %1121 = vmatpush.msra.mxu0 0.0
        %1122 = vmatpush.msra.mxu0 0.0
        %1123 = vmatpush.msra.mxu0 0.0
        %1124 = vmatpush.msra.mxu0 0.0
        %1125 = vmatpush.msra.mxu0 0.0
        %1126 = vmatpush.msra.mxu0 0.0
        %1127 = vmatpush.msra.mxu0 0.0
        %1128 = vmatpush.msra.mxu0 %v1048
        %1129 = vmatpush.msra.mxu0 %v1044
        %1130 = vmatpush.msra.mxu0 %v1040
        %1131 = vmatpush.msra.mxu0 %v1036
        %1132 = vmatmul.f32.gmra.mxu0 %v1052
        %v1133 = vpop.f32.mrf.mxu0
        %v1134 = vadd.f32 0.0, %v1133
        %1135 = vmatmul.f32.gmra.mxu0 %v1055
        %v1136 = vpop.f32.mrf.mxu0
        %v1137 = vadd.f32 0.0, %v1136
        %1138 = vmatmul.f32.gmra.mxu0 %v1058
        %v1139 = vpop.f32.mrf.mxu0
        %v1140 = vadd.f32 0.0, %v1139
        %1141 = vmatmul.f32.gmra.mxu0 %v1061
        %v1142 = vpop.f32.mrf.mxu0
        %v1143 = vadd.f32 0.0, %v1142
        %1144 = vmatmul.f32.gmra.mxu0 %v1064
        %v1145 = vpop.f32.mrf.mxu0
        %v1146 = vadd.f32 0.0, %v1145
        %1147 = vmatmul.f32.gmra.mxu0 %v1067
        %v1148 = vpop.f32.mrf.mxu0
        %v1149 = vadd.f32 0.0, %v1148
        %1150 = vmatmul.f32.gmra.mxu0 %v1070
        %v1151 = vpop.f32.mrf.mxu0
        %v1152 = vadd.f32 0.0, %v1151
        %1153 = vmatmul.f32.gmra.mxu0 %v1073
        %v1154 = vpop.f32.mrf.mxu0
        %v1155 = vadd.f32 0.0, %v1154
        %1156 = vdwg.mxu0
        %1157 = vmatpush.msra.mxu0 0.0
        %1158 = vmatpush.msra.mxu0 0.0
        %1159 = vmatpush.msra.mxu0 0.0
        %1160 = vmatpush.msra.mxu0 0.0
        %1161 = vmatpush.msra.mxu0 0.0
        %1162 = vmatpush.msra.mxu0 0.0
        %1163 = vmatpush.msra.mxu0 0.0
        %1164 = vmatpush.msra.mxu0 0.0
        %1165 = vmatpush.msra.mxu0 0.0
        %1166 = vmatpush.msra.mxu0 0.0
        %1167 = vmatpush.msra.mxu0 0.0
        %1168 = vmatpush.msra.mxu0 0.0
        %1169 = vmatpush.msra.mxu0 %v1049
        %1170 = vmatpush.msra.mxu0 %v1045
        %1171 = vmatpush.msra.mxu0 %v1041
        %1172 = vmatpush.msra.mxu0 %v1037
        %1173 = vmatmul.f32.gmra.mxu0 %v1052
        %v1174 = vpop.f32.mrf.mxu0
        %v1175 = vadd.f32 0.0, %v1174
        %1176 = vmatmul.f32.gmra.mxu0 %v1055
        %v1177 = vpop.f32.mrf.mxu0
        %v1178 = vadd.f32 0.0, %v1177
        %1179 = vmatmul.f32.gmra.mxu0 %v1058
        %v1180 = vpop.f32.mrf.mxu0
        %v1181 = vadd.f32 0.0, %v1180
        %1182 = vmatmul.f32.gmra.mxu0 %v1061
        %v1183 = vpop.f32.mrf.mxu0
        %v1184 = vadd.f32 0.0, %v1183
        %1185 = vmatmul.f32.gmra.mxu0 %v1064
        %v1186 = vpop.f32.mrf.mxu0
        %v1187 = vadd.f32 0.0, %v1186
        %1188 = vmatmul.f32.gmra.mxu0 %v1067
        %v1189 = vpop.f32.mrf.mxu0
        %v1190 = vadd.f32 0.0, %v1189
        %1191 = vmatmul.f32.gmra.mxu0 %v1070
        %v1192 = vpop.f32.mrf.mxu0
        %v1193 = vadd.f32 0.0, %v1192
        %1194 = vmatmul.f32.gmra.mxu0 %v1073
        %v1195 = vpop.f32.mrf.mxu0
        %v1196 = vadd.f32 0.0, %v1195
        %1197 = vdwg.mxu0
        %1198 = vmatpush.msra.mxu0 0.0
        %1199 = vmatpush.msra.mxu0 0.0
        %1200 = vmatpush.msra.mxu0 0.0
        %1201 = vmatpush.msra.mxu0 0.0
        %1202 = vmatpush.msra.mxu0 0.0
        %1203 = vmatpush.msra.mxu0 0.0
        %1204 = vmatpush.msra.mxu0 0.0
        %1205 = vmatpush.msra.mxu0 0.0
        %1206 = vmatpush.msra.mxu0 0.0
        %1207 = vmatpush.msra.mxu0 0.0
        %1208 = vmatpush.msra.mxu0 0.0
        %1209 = vmatpush.msra.mxu0 0.0
        %1210 = vmatpush.msra.mxu0 %v1050
        %1211 = vmatpush.msra.mxu0 %v1046
        %1212 = vmatpush.msra.mxu0 %v1042
        %1213 = vmatpush.msra.mxu0 %v1038
        %1214 = vmatmul.f32.gmra.mxu0 %v1052
        %v1215 = vpop.f32.mrf.mxu0
        %v1216 = vadd.f32 0.0, %v1215
        %1217 = vmatmul.f32.gmra.mxu0 %v1055
        %v1218 = vpop.f32.mrf.mxu0
        %v1219 = vadd.f32 0.0, %v1218
        %1220 = vmatmul.f32.gmra.mxu0 %v1058
        %v1221 = vpop.f32.mrf.mxu0
        %v1222 = vadd.f32 0.0, %v1221
        %1223 = vmatmul.f32.gmra.mxu0 %v1061
        %v1224 = vpop.f32.mrf.mxu0
        %v1225 = vadd.f32 0.0, %v1224
        %1226 = vmatmul.f32.gmra.mxu0 %v1064
        %v1227 = vpop.f32.mrf.mxu0
        %v1228 = vadd.f32 0.0, %v1227
        %1229 = vmatmul.f32.gmra.mxu0 %v1067
        %v1230 = vpop.f32.mrf.mxu0
        %v1231 = vadd.f32 0.0, %v1230
        %1232 = vmatmul.f32.gmra.mxu0 %v1070
        %v1233 = vpop.f32.mrf.mxu0
        %v1234 = vadd.f32 0.0, %v1233
        %1235 = vmatmul.f32.gmra.mxu0 %v1073
        %v1236 = vpop.f32.mrf.mxu0
        %v1237 = vadd.f32 0.0, %v1236
        %1238 = vdwg.mxu0
        %1239 = vst [vmem:[#allocation2] sm:$0xff] %v1093
        %1240 = vst [vmem:[#allocation2 + $0x8] sm:$0xff] %v1134
        %1241 = vst [vmem:[#allocation2 + $0x10] sm:$0xff] %v1175
        %1242 = vst [vmem:[#allocation2 + $0x18] sm:$0xff] %v1216
        %1243 = vst [vmem:[#allocation2 + $0x20] sm:$0xff] %v1096
        %1244 = vst [vmem:[#allocation2 + $0x28] sm:$0xff] %v1137
        %1245 = vst [vmem:[#allocation2 + $0x30] sm:$0xff] %v1178
        %1246 = vst [vmem:[#allocation2 + $0x38] sm:$0xff] %v1219
        %1247 = vst [vmem:[#allocation2 + $0x40] sm:$0xff] %v1099
        %1248 = vst [vmem:[#allocation2 + $0x48] sm:$0xff] %v1140
        %1249 = vst [vmem:[#allocation2 + $0x50] sm:$0xff] %v1181
        %1250 = vst [vmem:[#allocation2 + $0x58] sm:$0xff] %v1222
        %1251 = vst [vmem:[#allocation2 + $0x60] sm:$0xff] %v1102
        %1252 = vst [vmem:[#allocation2 + $0x68] sm:$0xff] %v1143
        %1253 = vst [vmem:[#allocation2 + $0x70] sm:$0xff] %v1184
        %1254 = vst [vmem:[#allocation2 + $0x78] sm:$0xff] %v1225
        %1255 = vst [vmem:[#allocation2 + $0x80] sm:$0xff] %v1105
        %1256 = vst [vmem:[#allocation2 + $0x88] sm:$0xff] %v1146
        %1257 = vst [vmem:[#allocation2 + $0x90] sm:$0xff] %v1187
        %1258 = vst [vmem:[#allocation2 + $0x98] sm:$0xff] %v1228
        %1259 = vst [vmem:[#allocation2 + $0xa0] sm:$0xff] %v1108
        %1260 = vst [vmem:[#allocation2 + $0xa8] sm:$0xff] %v1149
        %1261 = vst [vmem:[#allocation2 + $0xb0] sm:$0xff] %v1190
        %1262 = vst [vmem:[#allocation2 + $0xb8] sm:$0xff] %v1231
        %1263 = vst [vmem:[#allocation2 + $0xc0] sm:$0xff] %v1111
        %1264 = vst [vmem:[#allocation2 + $0xc8] sm:$0xff] %v1152
        %1265 = vst [vmem:[#allocation2 + $0xd0] sm:$0xff] %v1193
        %1266 = vst [vmem:[#allocation2 + $0xd8] sm:$0xff] %v1234
        %1267 = vst [vmem:[#allocation2 + $0xe0] sm:$0xff] %v1114
        %1268 = vst [vmem:[#allocation2 + $0xe8] sm:$0xff] %v1155
        %1269 = vst [vmem:[#allocation2 + $0xf0] sm:$0xff] %v1196
        %1270 = vst [vmem:[#allocation2 + $0xf8] sm:$0xff] %v1237
        %v1271 = vadd.f32 %v1093, %v1096
        %v1272 = vadd.f32 %v1271, %v1099
        %v1273 = vadd.f32 %v1272, %v1102
        %v1274 = vadd.f32 %v1273, %v1105
        %v1275 = vadd.f32 %v1274, %v1108
        %v1276 = vadd.f32 %v1275, %v1111
        %v1277 = vadd.f32 %v1276, %v1114
        %v1278 = vadd.f32 %v1134, %v1137
        %v1279 = vadd.f32 %v1278, %v1140
        %v1280 = vadd.f32 %v1279, %v1143
        %v1281 = vadd.f32 %v1280, %v1146
        %v1282 = vadd.f32 %v1281, %v1149
        %v1283 = vadd.f32 %v1282, %v1152
        %v1284 = vadd.f32 %v1283, %v1155
        %v1285 = vadd.f32 %v1175, %v1178
        %v1286 = vadd.f32 %v1285, %v1181
        %v1287 = vadd.f32 %v1286, %v1184
        %v1288 = vadd.f32 %v1287, %v1187
        %v1289 = vadd.f32 %v1288, %v1190
        %v1290 = vadd.f32 %v1289, %v1193
        %v1291 = vadd.f32 %v1290, %v1196
        %v1292 = vadd.f32 %v1216, %v1219
        %v1293 = vadd.f32 %v1292, %v1222
        %v1294 = vadd.f32 %v1293, %v1225
        %v1295 = vadd.f32 %v1294, %v1228
        %v1296 = vadd.f32 %v1295, %v1231
        %v1297 = vadd.f32 %v1296, %v1234
        %v1298 = vadd.f32 %v1297, %v1237
        %v1299 = vld [vmem:[#allocation22] sm:$0xf]
        %v1301 = vperm.slane %v1299, 0
        %v1302 = vperm.slane %v1299, 1
        %v1303 = vperm.slane %v1299, 2
        %v1304 = vperm.slane %v1299, 3
        %v1309 = vmul.f32 %v1277, %v1301
        %v1310 = vmul.f32 %v1284, %v1302
        %v1311 = vmul.f32 %v1291, %v1303
        %v1312 = vmul.f32 %v1298, %v1304
        %1313 = vst [vmem:[#allocation3] sm:$0xff] %v1309
        %1314 = vst [vmem:[#allocation3 + $0x8] sm:$0xff] %v1310
        %1315 = vst [vmem:[#allocation3 + $0x10] sm:$0xff] %v1311
        %1316 = vst [vmem:[#allocation3 + $0x18] sm:$0xff] %v1312
        loop: start=0, step=1, limit=8
        $region171: #{tpu_custom_call.1} parent=113 // loop_pre_header
          _
        $region172: #{tpu_custom_call.1} parent=113 // loop_header
          %s1318 = sphi 0, %s1322
          %p1319 = scmp.ge.s32.totalorder %s1318, 8
          %v1323 = vphi 0.0, %v1945
        $region173: #{tpu_custom_call.1} parent=113 // loop_header_branch
          %1321 = sbr.rel (%p1319) target = $region177
        $region174: #{tpu_custom_call.1} parent=113 // loop_body
          %s1324 = smul.u32 %s1318, 8
          %s1325 = scalar_lea.vmem %s667, %s1324 [#allocation7]
          %v1326 = vld [vmem:[%s1325] sm:$0xff]
          %v1327 = vld [vmem:[%s667] sm:$0xff]
          %v1328 = vld [vmem:[%s667 + $0x8] sm:$0xff]
          %v1329 = vld [vmem:[%s667 + $0x10] sm:$0xff]
          %v1330 = vld [vmem:[%s667 + $0x18] sm:$0xff]
          %v1331 = vld [vmem:[%s667 + $0x20] sm:$0xff]
          %v1332 = vld [vmem:[%s667 + $0x28] sm:$0xff]
          %v1333 = vld [vmem:[%s667 + $0x30] sm:$0xff]
          %v1334 = vld [vmem:[%s667 + $0x38] sm:$0xff]
          %v1335 = vsub.f32 %v1327, %v1326
          %v1336 = vsub.f32 %v1328, %v1326
          %v1337 = vsub.f32 %v1329, %v1326
          %v1338 = vsub.f32 %v1330, %v1326
          %v1339 = vsub.f32 %v1331, %v1326
          %v1340 = vsub.f32 %v1332, %v1326
          %v1341 = vsub.f32 %v1333, %v1326
          %v1342 = vsub.f32 %v1334, %v1326
          %v1343 = vld [vmem:[#allocation14] sm:$0x7]
          %v1344 = vld [vmem:[#allocation16] sm:$0x1]
          %v1346 = vperm.slane %v1344, 0
          %v1349 = vsel %vm786, %v1335, 0
          %v1352 = vsel %vm786, %v1336, 0
          %v1355 = vsel %vm786, %v1337, 0
          %v1358 = vsel %vm786, %v1338, 0
          %v1361 = vsel %vm786, %v1339, 0
          %v1364 = vsel %vm786, %v1340, 0
          %v1367 = vsel %vm786, %v1341, 0
          %v1370 = vsel %vm786, %v1342, 0
          %v1373 = vsel %vm811, %v1343, 0
          %1375 = vmatpush.msra.mxu0 0.0
          %1376 = vmatpush.msra.mxu0 0.0
          %1377 = vmatpush.msra.mxu0 0.0
          %1378 = vmatpush.msra.mxu0 0.0
          %1379 = vmatpush.msra.mxu0 0.0
          %1380 = vmatpush.msra.mxu0 0.0
          %1381 = vmatpush.msra.mxu0 0.0
          %1382 = vmatpush.msra.mxu0 0.0
          %1383 = vmatpush.msra.mxu0 0.0
          %1384 = vmatpush.msra.mxu0 0.0
          %1385 = vmatpush.msra.mxu0 0.0
          %1386 = vmatpush.msra.mxu0 0.0
          %1387 = vmatpush.msra.mxu0 0.0
          %1388 = vmatpush.msra.mxu0 0.0
          %1389 = vmatpush.msra.mxu0 0.0
          %1390 = vmatpush.msra.mxu0 %v1373
          %1391 = vmatmul.f32.gmra.mxu0 %v1349
          %v1392 = vpop.f32.mrf.mxu0
          %v1393 = vadd.f32 %v1346, %v1392
          %1394 = vmatmul.f32.gmra.mxu0 %v1352
          %v1395 = vpop.f32.mrf.mxu0
          %v1396 = vadd.f32 %v1346, %v1395
          %1397 = vmatmul.f32.gmra.mxu0 %v1355
          %v1398 = vpop.f32.mrf.mxu0
          %v1399 = vadd.f32 %v1346, %v1398
          %1400 = vmatmul.f32.gmra.mxu0 %v1358
          %v1401 = vpop.f32.mrf.mxu0
          %v1402 = vadd.f32 %v1346, %v1401
          %1403 = vmatmul.f32.gmra.mxu0 %v1361
          %v1404 = vpop.f32.mrf.mxu0
          %v1405 = vadd.f32 %v1346, %v1404
          %1406 = vmatmul.f32.gmra.mxu0 %v1364
          %v1407 = vpop.f32.mrf.mxu0
          %v1408 = vadd.f32 %v1346, %v1407
          %1409 = vmatmul.f32.gmra.mxu0 %v1367
          %v1410 = vpop.f32.mrf.mxu0
          %v1411 = vadd.f32 %v1346, %v1410
          %1412 = vmatmul.f32.gmra.mxu0 %v1370
          %v1413 = vpop.f32.mrf.mxu0
          %v1414 = vadd.f32 %v1346, %v1413
          %1415 = vdwg.mxu0
          %v1416 = vmax.f32 %v1393, 0.0
          %v1417 = vmax.f32 %v1396, 0.0
          %v1418 = vmax.f32 %v1399, 0.0
          %v1419 = vmax.f32 %v1402, 0.0
          %v1420 = vmax.f32 %v1405, 0.0
          %v1421 = vmax.f32 %v1408, 0.0
          %v1422 = vmax.f32 %v1411, 0.0
          %v1423 = vmax.f32 %v1414, 0.0
          %v1424 = vld [vmem:[#allocation17] sm:$0xff]
          %v1425 = vld [vmem:[#allocation19] sm:$0x1]
          %v1427 = vperm.slane %v1425, 0
          %vm1429 = vcmask 64512
          %v1431 = vsel %vm1429, %v1416, 0
          %v1434 = vsel %vm1429, %v1417, 0
          %v1437 = vsel %vm1429, %v1418, 0
          %v1440 = vsel %vm1429, %v1419, 0
          %v1443 = vsel %vm1429, %v1420, 0
          %v1446 = vsel %vm1429, %v1421, 0
          %v1449 = vsel %vm1429, %v1422, 0
          %v1452 = vsel %vm1429, %v1423, 0
          %1454 = vmatpush.msra.mxu0 0.0
          %1455 = vmatpush.msra.mxu0 0.0
          %1456 = vmatpush.msra.mxu0 0.0
          %1457 = vmatpush.msra.mxu0 0.0
          %1458 = vmatpush.msra.mxu0 0.0
          %1459 = vmatpush.msra.mxu0 0.0
          %1460 = vmatpush.msra.mxu0 0.0
          %1461 = vmatpush.msra.mxu0 0.0
          %1462 = vmatpush.msra.mxu0 0.0
          %1463 = vmatpush.msra.mxu0 0.0
          %1464 = vmatpush.msra.mxu0 0.0
          %1465 = vmatpush.msra.mxu0 0.0
          %1466 = vmatpush.msra.mxu0 0.0
          %1467 = vmatpush.msra.mxu0 0.0
          %1468 = vmatpush.msra.mxu0 0.0
          %1469 = vmatpush.msra.mxu0 %v1424
          %1470 = vmatmul.f32.gmra.mxu0 %v1431
          %v1471 = vpop.f32.mrf.mxu0
          %v1472 = vadd.f32 %v1427, %v1471
          %1473 = vmatmul.f32.gmra.mxu0 %v1434
          %v1474 = vpop.f32.mrf.mxu0
          %v1475 = vadd.f32 %v1427, %v1474
          %1476 = vmatmul.f32.gmra.mxu0 %v1437
          %v1477 = vpop.f32.mrf.mxu0
          %v1478 = vadd.f32 %v1427, %v1477
          %1479 = vmatmul.f32.gmra.mxu0 %v1440
          %v1480 = vpop.f32.mrf.mxu0
          %v1481 = vadd.f32 %v1427, %v1480
          %1482 = vmatmul.f32.gmra.mxu0 %v1443
          %v1483 = vpop.f32.mrf.mxu0
          %v1484 = vadd.f32 %v1427, %v1483
          %1485 = vmatmul.f32.gmra.mxu0 %v1446
          %v1486 = vpop.f32.mrf.mxu0
          %v1487 = vadd.f32 %v1427, %v1486
          %1488 = vmatmul.f32.gmra.mxu0 %v1449
          %v1489 = vpop.f32.mrf.mxu0
          %v1490 = vadd.f32 %v1427, %v1489
          %1491 = vmatmul.f32.gmra.mxu0 %v1452
          %v1492 = vpop.f32.mrf.mxu0
          %v1493 = vadd.f32 %v1427, %v1492
          %1494 = vdwg.mxu0
          %v1495 = vmax.f32 %v1472, 0.0
          %v1496 = vmax.f32 %v1475, 0.0
          %v1497 = vmax.f32 %v1478, 0.0
          %v1498 = vmax.f32 %v1481, 0.0
          %v1499 = vmax.f32 %v1484, 0.0
          %v1500 = vmax.f32 %v1487, 0.0
          %v1501 = vmax.f32 %v1490, 0.0
          %v1502 = vmax.f32 %v1493, 0.0
          %v1503 = vld [vmem:[#allocation20] sm:$0xff]
          %v1504 = vld [vmem:[#allocation20 + $0x8] sm:$0xff]
          %v1505 = vld [vmem:[#allocation20 + $0x10] sm:$0xff]
          %v1506 = vld [vmem:[#allocation20 + $0x18] sm:$0xff]
          %v1507 = vld [vmem:[#allocation20 + $0x20] sm:$0xff]
          %v1508 = vld [vmem:[#allocation20 + $0x28] sm:$0xff]
          %v1509 = vld [vmem:[#allocation20 + $0x30] sm:$0xff]
          %v1510 = vld [vmem:[#allocation20 + $0x38] sm:$0xff]
          %v1512 = vsel %vm961, %v1495, 0
          %v1515 = vsel %vm961, %v1496, 0
          %v1518 = vsel %vm961, %v1497, 0
          %v1521 = vsel %vm961, %v1498, 0
          %v1524 = vsel %vm961, %v1499, 0
          %v1527 = vsel %vm961, %v1500, 0
          %v1530 = vsel %vm961, %v1501, 0
          %v1533 = vsel %vm961, %v1502, 0
          %1535 = vmatpush.msra.mxu0 0.0
          %1536 = vmatpush.msra.mxu0 0.0
          %1537 = vmatpush.msra.mxu0 0.0
          %1538 = vmatpush.msra.mxu0 0.0
          %1539 = vmatpush.msra.mxu0 0.0
          %1540 = vmatpush.msra.mxu0 0.0
          %1541 = vmatpush.msra.mxu0 0.0
          %1542 = vmatpush.msra.mxu0 0.0
          %1543 = vmatpush.msra.mxu0 0.0
          %1544 = vmatpush.msra.mxu0 0.0
          %1545 = vmatpush.msra.mxu0 0.0
          %1546 = vmatpush.msra.mxu0 0.0
          %1547 = vmatpush.msra.mxu0 0.0
          %1548 = vmatpush.msra.mxu0 0.0
          %1549 = vmatpush.msra.mxu0 %v1507
          %1550 = vmatpush.msra.mxu0 %v1503
          %1551 = vmatmul.f32.gmra.mxu0 %v1512
          %v1552 = vpop.f32.mrf.mxu0
          %v1553 = vadd.f32 0.0, %v1552
          %1554 = vmatmul.f32.gmra.mxu0 %v1515
          %v1555 = vpop.f32.mrf.mxu0
          %v1556 = vadd.f32 0.0, %v1555
          %1557 = vmatmul.f32.gmra.mxu0 %v1518
          %v1558 = vpop.f32.mrf.mxu0
          %v1559 = vadd.f32 0.0, %v1558
          %1560 = vmatmul.f32.gmra.mxu0 %v1521
          %v1561 = vpop.f32.mrf.mxu0
          %v1562 = vadd.f32 0.0, %v1561
          %1563 = vmatmul.f32.gmra.mxu0 %v1524
          %v1564 = vpop.f32.mrf.mxu0
          %v1565 = vadd.f32 0.0, %v1564
          %1566 = vmatmul.f32.gmra.mxu0 %v1527
          %v1567 = vpop.f32.mrf.mxu0
          %v1568 = vadd.f32 0.0, %v1567
          %1569 = vmatmul.f32.gmra.mxu0 %v1530
          %v1570 = vpop.f32.mrf.mxu0
          %v1571 = vadd.f32 0.0, %v1570
          %1572 = vmatmul.f32.gmra.mxu0 %v1533
          %v1573 = vpop.f32.mrf.mxu0
          %v1574 = vadd.f32 0.0, %v1573
          %1575 = vdwg.mxu0
          %1576 = vmatpush.msra.mxu0 0.0
          %1577 = vmatpush.msra.mxu0 0.0
          %1578 = vmatpush.msra.mxu0 0.0
          %1579 = vmatpush.msra.mxu0 0.0
          %1580 = vmatpush.msra.mxu0 0.0
          %1581 = vmatpush.msra.mxu0 0.0
          %1582 = vmatpush.msra.mxu0 0.0
          %1583 = vmatpush.msra.mxu0 0.0
          %1584 = vmatpush.msra.mxu0 0.0
          %1585 = vmatpush.msra.mxu0 0.0
          %1586 = vmatpush.msra.mxu0 0.0
          %1587 = vmatpush.msra.mxu0 0.0
          %1588 = vmatpush.msra.mxu0 0.0
          %1589 = vmatpush.msra.mxu0 0.0
          %1590 = vmatpush.msra.mxu0 %v1508
          %1591 = vmatpush.msra.mxu0 %v1504
          %1592 = vmatmul.f32.gmra.mxu0 %v1512
          %v1593 = vpop.f32.mrf.mxu0
          %v1594 = vadd.f32 0.0, %v1593
          %1595 = vmatmul.f32.gmra.mxu0 %v1515
          %v1596 = vpop.f32.mrf.mxu0
          %v1597 = vadd.f32 0.0, %v1596
          %1598 = vmatmul.f32.gmra.mxu0 %v1518
          %v1599 = vpop.f32.mrf.mxu0
          %v1600 = vadd.f32 0.0, %v1599
          %1601 = vmatmul.f32.gmra.mxu0 %v1521
          %v1602 = vpop.f32.mrf.mxu0
          %v1603 = vadd.f32 0.0, %v1602
          %1604 = vmatmul.f32.gmra.mxu0 %v1524
          %v1605 = vpop.f32.mrf.mxu0
          %v1606 = vadd.f32 0.0, %v1605
          %1607 = vmatmul.f32.gmra.mxu0 %v1527
          %v1608 = vpop.f32.mrf.mxu0
          %v1609 = vadd.f32 0.0, %v1608
          %1610 = vmatmul.f32.gmra.mxu0 %v1530
          %v1611 = vpop.f32.mrf.mxu0
          %v1612 = vadd.f32 0.0, %v1611
          %1613 = vmatmul.f32.gmra.mxu0 %v1533
          %v1614 = vpop.f32.mrf.mxu0
          %v1615 = vadd.f32 0.0, %v1614
          %1616 = vdwg.mxu0
          %1617 = vmatpush.msra.mxu0 0.0
          %1618 = vmatpush.msra.mxu0 0.0
          %1619 = vmatpush.msra.mxu0 0.0
          %1620 = vmatpush.msra.mxu0 0.0
          %1621 = vmatpush.msra.mxu0 0.0
          %1622 = vmatpush.msra.mxu0 0.0
          %1623 = vmatpush.msra.mxu0 0.0
          %1624 = vmatpush.msra.mxu0 0.0
          %1625 = vmatpush.msra.mxu0 0.0
          %1626 = vmatpush.msra.mxu0 0.0
          %1627 = vmatpush.msra.mxu0 0.0
          %1628 = vmatpush.msra.mxu0 0.0
          %1629 = vmatpush.msra.mxu0 0.0
          %1630 = vmatpush.msra.mxu0 0.0
          %1631 = vmatpush.msra.mxu0 %v1509
          %1632 = vmatpush.msra.mxu0 %v1505
          %1633 = vmatmul.f32.gmra.mxu0 %v1512
          %v1634 = vpop.f32.mrf.mxu0
          %v1635 = vadd.f32 0.0, %v1634
          %1636 = vmatmul.f32.gmra.mxu0 %v1515
          %v1637 = vpop.f32.mrf.mxu0
          %v1638 = vadd.f32 0.0, %v1637
          %1639 = vmatmul.f32.gmra.mxu0 %v1518
          %v1640 = vpop.f32.mrf.mxu0
          %v1641 = vadd.f32 0.0, %v1640
          %1642 = vmatmul.f32.gmra.mxu0 %v1521
          %v1643 = vpop.f32.mrf.mxu0
          %v1644 = vadd.f32 0.0, %v1643
          %1645 = vmatmul.f32.gmra.mxu0 %v1524
          %v1646 = vpop.f32.mrf.mxu0
          %v1647 = vadd.f32 0.0, %v1646
          %1648 = vmatmul.f32.gmra.mxu0 %v1527
          %v1649 = vpop.f32.mrf.mxu0
          %v1650 = vadd.f32 0.0, %v1649
          %1651 = vmatmul.f32.gmra.mxu0 %v1530
          %v1652 = vpop.f32.mrf.mxu0
          %v1653 = vadd.f32 0.0, %v1652
          %1654 = vmatmul.f32.gmra.mxu0 %v1533
          %v1655 = vpop.f32.mrf.mxu0
          %v1656 = vadd.f32 0.0, %v1655
          %1657 = vdwg.mxu0
          %1658 = vmatpush.msra.mxu0 0.0
          %1659 = vmatpush.msra.mxu0 0.0
          %1660 = vmatpush.msra.mxu0 0.0
          %1661 = vmatpush.msra.mxu0 0.0
          %1662 = vmatpush.msra.mxu0 0.0
          %1663 = vmatpush.msra.mxu0 0.0
          %1664 = vmatpush.msra.mxu0 0.0
          %1665 = vmatpush.msra.mxu0 0.0
          %1666 = vmatpush.msra.mxu0 0.0
          %1667 = vmatpush.msra.mxu0 0.0
          %1668 = vmatpush.msra.mxu0 0.0
          %1669 = vmatpush.msra.mxu0 0.0
          %1670 = vmatpush.msra.mxu0 0.0
          %1671 = vmatpush.msra.mxu0 0.0
          %1672 = vmatpush.msra.mxu0 %v1510
          %1673 = vmatpush.msra.mxu0 %v1506
          %1674 = vmatmul.f32.gmra.mxu0 %v1512
          %v1675 = vpop.f32.mrf.mxu0
          %v1676 = vadd.f32 0.0, %v1675
          %1677 = vmatmul.f32.gmra.mxu0 %v1515
          %v1678 = vpop.f32.mrf.mxu0
          %v1679 = vadd.f32 0.0, %v1678
          %1680 = vmatmul.f32.gmra.mxu0 %v1518
          %v1681 = vpop.f32.mrf.mxu0
          %v1682 = vadd.f32 0.0, %v1681
          %1683 = vmatmul.f32.gmra.mxu0 %v1521
          %v1684 = vpop.f32.mrf.mxu0
          %v1685 = vadd.f32 0.0, %v1684
          %1686 = vmatmul.f32.gmra.mxu0 %v1524
          %v1687 = vpop.f32.mrf.mxu0
          %v1688 = vadd.f32 0.0, %v1687
          %1689 = vmatmul.f32.gmra.mxu0 %v1527
          %v1690 = vpop.f32.mrf.mxu0
          %v1691 = vadd.f32 0.0, %v1690
          %1692 = vmatmul.f32.gmra.mxu0 %v1530
          %v1693 = vpop.f32.mrf.mxu0
          %v1694 = vadd.f32 0.0, %v1693
          %1695 = vmatmul.f32.gmra.mxu0 %v1533
          %v1696 = vpop.f32.mrf.mxu0
          %v1697 = vadd.f32 0.0, %v1696
          %1698 = vdwg.mxu0
          %v1699 = vld [vmem:[#allocation2] sm:$0xff]
          %v1700 = vld [vmem:[#allocation2 + $0x8] sm:$0xff]
          %v1701 = vld [vmem:[#allocation2 + $0x10] sm:$0xff]
          %v1702 = vld [vmem:[#allocation2 + $0x18] sm:$0xff]
          %v1703 = vld [vmem:[#allocation2 + $0x20] sm:$0xff]
          %v1704 = vld [vmem:[#allocation2 + $0x28] sm:$0xff]
          %v1705 = vld [vmem:[#allocation2 + $0x30] sm:$0xff]
          %v1706 = vld [vmem:[#allocation2 + $0x38] sm:$0xff]
          %v1707 = vld [vmem:[#allocation2 + $0x40] sm:$0xff]
          %v1708 = vld [vmem:[#allocation2 + $0x48] sm:$0xff]
          %v1709 = vld [vmem:[#allocation2 + $0x50] sm:$0xff]
          %v1710 = vld [vmem:[#allocation2 + $0x58] sm:$0xff]
          %v1711 = vld [vmem:[#allocation2 + $0x60] sm:$0xff]
          %v1712 = vld [vmem:[#allocation2 + $0x68] sm:$0xff]
          %v1713 = vld [vmem:[#allocation2 + $0x70] sm:$0xff]
          %v1714 = vld [vmem:[#allocation2 + $0x78] sm:$0xff]
          %v1715 = vld [vmem:[#allocation2 + $0x80] sm:$0xff]
          %v1716 = vld [vmem:[#allocation2 + $0x88] sm:$0xff]
          %v1717 = vld [vmem:[#allocation2 + $0x90] sm:$0xff]
          %v1718 = vld [vmem:[#allocation2 + $0x98] sm:$0xff]
          %v1719 = vld [vmem:[#allocation2 + $0xa0] sm:$0xff]
          %v1720 = vld [vmem:[#allocation2 + $0xa8] sm:$0xff]
          %v1721 = vld [vmem:[#allocation2 + $0xb0] sm:$0xff]
          %v1722 = vld [vmem:[#allocation2 + $0xb8] sm:$0xff]
          %v1723 = vld [vmem:[#allocation2 + $0xc0] sm:$0xff]
          %v1724 = vld [vmem:[#allocation2 + $0xc8] sm:$0xff]
          %v1725 = vld [vmem:[#allocation2 + $0xd0] sm:$0xff]
          %v1726 = vld [vmem:[#allocation2 + $0xd8] sm:$0xff]
          %v1727 = vld [vmem:[#allocation2 + $0xe0] sm:$0xff]
          %v1728 = vld [vmem:[#allocation2 + $0xe8] sm:$0xff]
          %v1729 = vld [vmem:[#allocation2 + $0xf0] sm:$0xff]
          %v1730 = vld [vmem:[#allocation2 + $0xf8] sm:$0xff]
          %v1731 = vmul.f32 %v1699, %v1553
          %v1732 = vmul.f32 %v1700, %v1594
          %v1733 = vmul.f32 %v1701, %v1635
          %v1734 = vmul.f32 %v1702, %v1676
          %v1735 = vmul.f32 %v1703, %v1556
          %v1736 = vmul.f32 %v1704, %v1597
          %v1737 = vmul.f32 %v1705, %v1638
          %v1738 = vmul.f32 %v1706, %v1679
          %v1739 = vmul.f32 %v1707, %v1559
          %v1740 = vmul.f32 %v1708, %v1600
          %v1741 = vmul.f32 %v1709, %v1641
          %v1742 = vmul.f32 %v1710, %v1682
          %v1743 = vmul.f32 %v1711, %v1562
          %v1744 = vmul.f32 %v1712, %v1603
          %v1745 = vmul.f32 %v1713, %v1644
          %v1746 = vmul.f32 %v1714, %v1685
          %v1747 = vmul.f32 %v1715, %v1565
          %v1748 = vmul.f32 %v1716, %v1606
          %v1749 = vmul.f32 %v1717, %v1647
          %v1750 = vmul.f32 %v1718, %v1688
          %v1751 = vmul.f32 %v1719, %v1568
          %v1752 = vmul.f32 %v1720, %v1609
          %v1753 = vmul.f32 %v1721, %v1650
          %v1754 = vmul.f32 %v1722, %v1691
          %v1755 = vmul.f32 %v1723, %v1571
          %v1756 = vmul.f32 %v1724, %v1612
          %v1757 = vmul.f32 %v1725, %v1653
          %v1758 = vmul.f32 %v1726, %v1694
          %v1759 = vmul.f32 %v1727, %v1574
          %v1760 = vmul.f32 %v1728, %v1615
          %v1761 = vmul.f32 %v1729, %v1656
          %v1762 = vmul.f32 %v1730, %v1697
          %v1763 = vadd.f32 %v1731, %v1735
          %v1764 = vadd.f32 %v1763, %v1739
          %v1765 = vadd.f32 %v1764, %v1743
          %v1766 = vadd.f32 %v1765, %v1747
          %v1767 = vadd.f32 %v1766, %v1751
          %v1768 = vadd.f32 %v1767, %v1755
          %v1769 = vadd.f32 %v1768, %v1759
          %v1770 = vadd.f32 %v1732, %v1736
          %v1771 = vadd.f32 %v1770, %v1740
          %v1772 = vadd.f32 %v1771, %v1744
          %v1773 = vadd.f32 %v1772, %v1748
          %v1774 = vadd.f32 %v1773, %v1752
          %v1775 = vadd.f32 %v1774, %v1756
          %v1776 = vadd.f32 %v1775, %v1760
          %v1777 = vadd.f32 %v1733, %v1737
          %v1778 = vadd.f32 %v1777, %v1741
          %v1779 = vadd.f32 %v1778, %v1745
          %v1780 = vadd.f32 %v1779, %v1749
          %v1781 = vadd.f32 %v1780, %v1753
          %v1782 = vadd.f32 %v1781, %v1757
          %v1783 = vadd.f32 %v1782, %v1761
          %v1784 = vadd.f32 %v1734, %v1738
          %v1785 = vadd.f32 %v1784, %v1742
          %v1786 = vadd.f32 %v1785, %v1746
          %v1787 = vadd.f32 %v1786, %v1750
          %v1788 = vadd.f32 %v1787, %v1754
          %v1789 = vadd.f32 %v1788, %v1758
          %v1790 = vadd.f32 %v1789, %v1762
          %v1791 = vld [vmem:[#allocation3] sm:$0xff]
          %v1792 = vld [vmem:[#allocation3 + $0x8] sm:$0xff]
          %v1793 = vld [vmem:[#allocation3 + $0x10] sm:$0xff]
          %v1794 = vld [vmem:[#allocation3 + $0x18] sm:$0xff]
          %v1795 = vadd.f32 %v1769, %v1791
          %v1796 = vadd.f32 %v1776, %v1792
          %v1797 = vadd.f32 %v1783, %v1793
          %v1798 = vadd.f32 %v1790, %v1794
          %s1799 = smul.u32 %s1318, 512
          %s1800 = scalar_lea.vmem [#allocation25], %s1799
          %v1801 = vld [vmem:[%s1800] sm:$0xff]
          %v1802 = vld [vmem:[%s1800 + $0x8] sm:$0xff]
          %v1803 = vld [vmem:[%s1800 + $0x10] sm:$0xff]
          %v1804 = vld [vmem:[%s1800 + $0x18] sm:$0xff]
          %v1805 = vld [vmem:[%s1800 + $0x20] sm:$0xff]
          %v1806 = vld [vmem:[%s1800 + $0x28] sm:$0xff]
          %v1807 = vld [vmem:[%s1800 + $0x30] sm:$0xff]
          %v1808 = vld [vmem:[%s1800 + $0x38] sm:$0xff]
          %v1809 = vld [vmem:[%s1800 + $0x40] sm:$0xff]
          %v1810 = vld [vmem:[%s1800 + $0x48] sm:$0xff]
          %v1811 = vld [vmem:[%s1800 + $0x50] sm:$0xff]
          %v1812 = vld [vmem:[%s1800 + $0x58] sm:$0xff]
          %v1813 = vld [vmem:[%s1800 + $0x60] sm:$0xff]
          %v1814 = vld [vmem:[%s1800 + $0x68] sm:$0xff]
          %v1815 = vld [vmem:[%s1800 + $0x70] sm:$0xff]
          %v1816 = vld [vmem:[%s1800 + $0x78] sm:$0xff]
          %v1817 = vld [vmem:[%s1800 + $0x80] sm:$0xff]
          %v1818 = vld [vmem:[%s1800 + $0x88] sm:$0xff]
          %v1819 = vld [vmem:[%s1800 + $0x90] sm:$0xff]
          %v1820 = vld [vmem:[%s1800 + $0x98] sm:$0xff]
          %v1821 = vld [vmem:[%s1800 + $0xa0] sm:$0xff]
          %v1822 = vld [vmem:[%s1800 + $0xa8] sm:$0xff]
          %v1823 = vld [vmem:[%s1800 + $0xb0] sm:$0xff]
          %v1824 = vld [vmem:[%s1800 + $0xb8] sm:$0xff]
          %v1825 = vld [vmem:[%s1800 + $0xc0] sm:$0xff]
          %v1826 = vld [vmem:[%s1800 + $0xc8] sm:$0xff]
          %v1827 = vld [vmem:[%s1800 + $0xd0] sm:$0xff]
          %v1828 = vld [vmem:[%s1800 + $0xd8] sm:$0xff]
          %v1829 = vld [vmem:[%s1800 + $0xe0] sm:$0xff]
          %v1830 = vld [vmem:[%s1800 + $0xe8] sm:$0xff]
          %v1831 = vld [vmem:[%s1800 + $0xf0] sm:$0xff]
          %v1832 = vld [vmem:[%s1800 + $0xf8] sm:$0xff]
          %v1833 = vld [vmem:[%s1800 + $0x100] sm:$0xff]
          %v1834 = vld [vmem:[%s1800 + $0x108] sm:$0xff]
          %v1835 = vld [vmem:[%s1800 + $0x110] sm:$0xff]
          %v1836 = vld [vmem:[%s1800 + $0x118] sm:$0xff]
          %v1837 = vld [vmem:[%s1800 + $0x120] sm:$0xff]
          %v1838 = vld [vmem:[%s1800 + $0x128] sm:$0xff]
          %v1839 = vld [vmem:[%s1800 + $0x130] sm:$0xff]
          %v1840 = vld [vmem:[%s1800 + $0x138] sm:$0xff]
          %v1841 = vld [vmem:[%s1800 + $0x140] sm:$0xff]
          %v1842 = vld [vmem:[%s1800 + $0x148] sm:$0xff]
          %v1843 = vld [vmem:[%s1800 + $0x150] sm:$0xff]
          %v1844 = vld [vmem:[%s1800 + $0x158] sm:$0xff]
          %v1845 = vld [vmem:[%s1800 + $0x160] sm:$0xff]
          %v1846 = vld [vmem:[%s1800 + $0x168] sm:$0xff]
          %v1847 = vld [vmem:[%s1800 + $0x170] sm:$0xff]
          %v1848 = vld [vmem:[%s1800 + $0x178] sm:$0xff]
          %v1849 = vld [vmem:[%s1800 + $0x180] sm:$0xff]
          %v1850 = vld [vmem:[%s1800 + $0x188] sm:$0xff]
          %v1851 = vld [vmem:[%s1800 + $0x190] sm:$0xff]
          %v1852 = vld [vmem:[%s1800 + $0x198] sm:$0xff]
          %v1853 = vld [vmem:[%s1800 + $0x1a0] sm:$0xff]
          %v1854 = vld [vmem:[%s1800 + $0x1a8] sm:$0xff]
          %v1855 = vld [vmem:[%s1800 + $0x1b0] sm:$0xff]
          %v1856 = vld [vmem:[%s1800 + $0x1b8] sm:$0xff]
          %v1857 = vld [vmem:[%s1800 + $0x1c0] sm:$0xff]
          %v1858 = vld [vmem:[%s1800 + $0x1c8] sm:$0xff]
          %v1859 = vld [vmem:[%s1800 + $0x1d0] sm:$0xff]
          %v1860 = vld [vmem:[%s1800 + $0x1d8] sm:$0xff]
          %v1861 = vld [vmem:[%s1800 + $0x1e0] sm:$0xff]
          %v1862 = vld [vmem:[%s1800 + $0x1e8] sm:$0xff]
          %v1863 = vld [vmem:[%s1800 + $0x1f0] sm:$0xff]
          %v1864 = vld [vmem:[%s1800 + $0x1f8] sm:$0xff]
          %1865 = vmatpush.msra.mxu0 %v1816
          %1866 = vmatpush.msra.mxu0 %v1815
          %1867 = vmatpush.msra.mxu0 %v1814
          %1868 = vmatpush.msra.mxu0 %v1813
          %1869 = vmatpush.msra.mxu0 %v1812
          %1870 = vmatpush.msra.mxu0 %v1811
          %1871 = vmatpush.msra.mxu0 %v1810
          %1872 = vmatpush.msra.mxu0 %v1809
          %1873 = vmatpush.msra.mxu0 %v1808
          %1874 = vmatpush.msra.mxu0 %v1807
          %1875 = vmatpush.msra.mxu0 %v1806
          %1876 = vmatpush.msra.mxu0 %v1805
          %1877 = vmatpush.msra.mxu0 %v1804
          %1878 = vmatpush.msra.mxu0 %v1803
          %1879 = vmatpush.msra.mxu0 %v1802
          %1880 = vmatpush.msra.mxu0 %v1801
          %1881 = vmatmul.f32.gmra.mxu0 %v1795
          %v1882 = vpop.f32.mrf.mxu0
          %v1883 = vadd.f32 0.0, %v1882
          %1884 = vdwg.mxu0
          %1885 = vmatpush.msra.mxu0 %v1832
          %1886 = vmatpush.msra.mxu0 %v1831
          %1887 = vmatpush.msra.mxu0 %v1830
          %1888 = vmatpush.msra.mxu0 %v1829
          %1889 = vmatpush.msra.mxu0 %v1828
          %1890 = vmatpush.msra.mxu0 %v1827
          %1891 = vmatpush.msra.mxu0 %v1826
          %1892 = vmatpush.msra.mxu0 %v1825
          %1893 = vmatpush.msra.mxu0 %v1824
          %1894 = vmatpush.msra.mxu0 %v1823
          %1895 = vmatpush.msra.mxu0 %v1822
          %1896 = vmatpush.msra.mxu0 %v1821
          %1897 = vmatpush.msra.mxu0 %v1820
          %1898 = vmatpush.msra.mxu0 %v1819
          %1899 = vmatpush.msra.mxu0 %v1818
          %1900 = vmatpush.msra.mxu0 %v1817
          %1901 = vmatmul.f32.gmra.mxu0 %v1796
          %v1902 = vpop.f32.mrf.mxu0
          %v1903 = vadd.f32 %v1883, %v1902
          %1904 = vdwg.mxu0
          %1905 = vmatpush.msra.mxu0 %v1848
          %1906 = vmatpush.msra.mxu0 %v1847
          %1907 = vmatpush.msra.mxu0 %v1846
          %1908 = vmatpush.msra.mxu0 %v1845
          %1909 = vmatpush.msra.mxu0 %v1844
          %1910 = vmatpush.msra.mxu0 %v1843
          %1911 = vmatpush.msra.mxu0 %v1842
          %1912 = vmatpush.msra.mxu0 %v1841
          %1913 = vmatpush.msra.mxu0 %v1840
          %1914 = vmatpush.msra.mxu0 %v1839
          %1915 = vmatpush.msra.mxu0 %v1838
          %1916 = vmatpush.msra.mxu0 %v1837
          %1917 = vmatpush.msra.mxu0 %v1836
          %1918 = vmatpush.msra.mxu0 %v1835
          %1919 = vmatpush.msra.mxu0 %v1834
          %1920 = vmatpush.msra.mxu0 %v1833
          %1921 = vmatmul.f32.gmra.mxu0 %v1797
          %v1922 = vpop.f32.mrf.mxu0
          %v1923 = vadd.f32 %v1903, %v1922
          %1924 = vdwg.mxu0
          %1925 = vmatpush.msra.mxu0 %v1864
          %1926 = vmatpush.msra.mxu0 %v1863
          %1927 = vmatpush.msra.mxu0 %v1862
          %1928 = vmatpush.msra.mxu0 %v1861
          %1929 = vmatpush.msra.mxu0 %v1860
          %1930 = vmatpush.msra.mxu0 %v1859
          %1931 = vmatpush.msra.mxu0 %v1858
          %1932 = vmatpush.msra.mxu0 %v1857
          %1933 = vmatpush.msra.mxu0 %v1856
          %1934 = vmatpush.msra.mxu0 %v1855
          %1935 = vmatpush.msra.mxu0 %v1854
          %1936 = vmatpush.msra.mxu0 %v1853
          %1937 = vmatpush.msra.mxu0 %v1852
          %1938 = vmatpush.msra.mxu0 %v1851
          %1939 = vmatpush.msra.mxu0 %v1850
          %1940 = vmatpush.msra.mxu0 %v1849
          %1941 = vmatmul.f32.gmra.mxu0 %v1798
          %v1942 = vpop.f32.mrf.mxu0
          %v1943 = vadd.f32 %v1923, %v1942
          %1944 = vdwg.mxu0
          %v1945 = vadd.f32 %v1323, %v1943
        $region175: #{tpu_custom_call.1} parent=113 // loop_footer
          %s1322 = sadd.s32 1, %s1318
        $region176: #{tpu_custom_call.1} parent=113 // loop_footer_branch
          %1317 = sbr.rel target = $region172
        $region177: #{tpu_custom_call.1} parent=113 // loop_exit
          _
        %v1946 = vmax.f32 %v1323, 0.0
        %1947 = vst [vmem:[%s776] sm:$0xff] %v1946
        %s1948 = sand.u32 %s371, 1
        %s1949 = scalar_lea.sflag [#allocation6], %s1948
        %s1950 = sand.u32 %s371, 1
        %s1951 = smul.addr %s1950, 8
        %s1952 = scalar_lea.vmem [#allocation26], %s1951
        // Predicated region
        $region178: #{tpu_custom_call.1} parent=113 // pred_check
          %p1953 = pneg %p381
        $region179: #{tpu_custom_call.1} parent=113 // pred_check_branch
          %1955 = sbr.rel (%p1953) target = $region181
        $region180: #{tpu_custom_call.1} parent=113 // pred_region
          %1957 = vsyncadd %s1949, 0
          %s1958 = smul.addr %s38, 8
          %s1959 = scalar_lea.hbm %s15, %s1958
          %s1961 = sshll.u32 %s1952, 4
          %s1962 = int_to_ptr.vmem [resolvable:$true] %s1961
          %s1963 = sshll.u32 %s1959, 4
          %s1964 = int_to_ptr.hbm [resolvable:$true] %s1963
          %1966 = dma.vmem_to_hbm [thread:$0]  %s1962, 128, %s1964, %s1949
        $region181: #{tpu_custom_call.1} parent=113 // pred_fallthru
          _
      $region114: #{tpu_custom_call.1} parent=5 // pred_fallthru
        _
      %p1967 = scmp.le.s32.totalorder 2, %s33
      // Predicated region
      $region182: #{tpu_custom_call.1} parent=5 // pred_check
        %p1968 = pneg %p1967
      $region183: #{tpu_custom_call.1} parent=5 // pred_check_branch
        %1970 = sbr.rel (%p1968) target = $region185
      $region184: #{tpu_custom_call.1} parent=5 // pred_region
        %s1971 = ssub.s32 %s33, 2
        // Predicated region
        $region186: #{tpu_custom_call.1} parent=184 // pred_check
          %p1972 = pneg %p387
        $region187: #{tpu_custom_call.1} parent=184 // pred_check_branch
          %1974 = sbr.rel (%p1972) target = $region189
        $region188: #{tpu_custom_call.1} parent=184 // pred_region
          %s1975 = sand.u32 %s372, 1
          %s1976 = scalar_lea.sflag [#allocation6], %s1975
          %s1977 = sand.u32 %s372, 1
          %s1978 = smul.addr %s1977, 8
          %s1979 = scalar_lea.vmem [#allocation26], %s1978
          %1981 = dma.done %s1976, 128
        $region189: #{tpu_custom_call.1} parent=184 // pred_fallthru
          _
      $region185: #{tpu_custom_call.1} parent=5 // pred_fallthru
        _
    $region6: #{tpu_custom_call.1} parent=1 // loop_footer
      %s37 = sadd.s32 1, %s33
    $region7: #{tpu_custom_call.1} parent=1 // loop_footer_branch
      %32 = sbr.rel target = $region3
    $region8: #{tpu_custom_call.1} parent=1 // loop_exit
      _
    %1982 = vsyncpa [#allocation5], 1
    %s1983 = scalar_lea.sflag [#allocation5], 1
    %1984 = vsyncpa %s1983, 1
    %1985 = vsyncpa [#allocation9], 1
    %1986 = vsyncpa [#allocation12], 1
    %1987 = vsyncpa [#allocation15], 1
    %1988 = vsyncpa [#allocation18], 1
    %1989 = vsyncpa [#allocation21], 1
    %1990 = vsyncpa [#allocation24], 1
    %1991 = vsyncpa [#allocation6], 1
    %s1992 = scalar_lea.sflag [#allocation6], 1
    %1993 = vsyncpa %s1992, 1

</llo_original>
